<compile_context>
chip_gen: v5e
topology: v5e:2x2
jax: 0.10.0
libtpu: 0.0.40
codegen_flags: <defaults>
</compile_context>

<pallas_src>
import jax
import jax.numpy as jnp
from jax.experimental import pallas as pl
from jax.experimental.pallas import tpu as pltpu

LN_EPS = 1e-12  # BERT LayerNorm epsilon


# ----------------------------------------------------------------------------
# Per-generation VMEM limit (leave headroom for Mosaic scratch / double buffers)
# ----------------------------------------------------------------------------
_VMEM_LIMIT_CACHE = None


def _vmem_limit_bytes():
    global _VMEM_LIMIT_CACHE
    if _VMEM_LIMIT_CACHE is not None:
        return _VMEM_LIMIT_CACHE
    try:
        cap = int(pltpu.get_tpu_info().vmem_capacity_bytes)
    except Exception:  # pragma: no cover - query unavailable on this stack
        cap = 64 * 1024 * 1024  # conservative (v7x-sized) fallback
    if cap <= 0:
        cap = 64 * 1024 * 1024
    # v7x: 64 MiB physical -> ~48 MiB; v5e/v6e: 128 MiB physical -> 112 MiB.
    _VMEM_LIMIT_CACHE = max(32 * 1024 * 1024,
                            min(cap - 16 * 1024 * 1024, 112 * 1024 * 1024))
    return _VMEM_LIMIT_CACHE


# ----------------------------------------------------------------------------
# Small math helpers (lower cleanly in Mosaic: exp / mul / div / select only)
# ----------------------------------------------------------------------------
def _layer_norm(x, gamma, beta):
    mu = jnp.mean(x, axis=-1, keepdims=True)
    var = jnp.mean((x - mu) ** 2, axis=-1, keepdims=True)
    return (x - mu) * jax.lax.rsqrt(var + LN_EPS) * gamma + beta


def _erf_approx(x):
    # Abramowitz & Stegun 7.1.26 rational approximation, |err| <= 1.5e-7.
    a1, a2, a3, a4, a5 = 0.254829592, -0.284496736, 1.421413741, -1.453152027, 1.061405429
    p = 0.3275911
    sign = jnp.where(x < 0.0, -1.0, 1.0)
    ax = x * sign
    t = 1.0 / (1.0 + p * ax)
    poly = ((((a5 * t + a4) * t + a3) * t + a2) * t + a1) * t
    return sign * (1.0 - poly * jnp.exp(-ax * ax))


def _gelu_erf(x):
    # HF BERT uses exact (erf) GELU.
    return 0.5 * x * (1.0 + _erf_approx(x * 0.7071067811865476))


# ----------------------------------------------------------------------------
# Single-buffering for constant-index operands (feature-detected)
# ----------------------------------------------------------------------------
_SPEC_KWARGS_CACHE = None


def _const_spec_kwargs():
    """Extra BlockSpec kwargs for operands whose block index never changes."""
    global _SPEC_KWARGS_CACHE
    if _SPEC_KWARGS_CACHE is not None:
        return _SPEC_KWARGS_CACHE
    try:
        mode = pl.Buffered(1)

        def _probe(x_ref, o_ref):
            o_ref[...] = x_ref[...] + 1.0

        out = pl.pallas_call(
            _probe,
            out_shape=jax.ShapeDtypeStruct((8, 128), jnp.float32),
            grid=(2,),
            in_specs=[pl.BlockSpec((8, 128), lambda i: (0, 0), pipeline_mode=mode)],
            out_specs=pl.BlockSpec((8, 128), lambda i: (0, 0)),
        )(jnp.zeros((8, 128), jnp.float32))
        jax.block_until_ready(out)
        _SPEC_KWARGS_CACHE = {"pipeline_mode": mode}
    except Exception:  # pragma: no cover - Pallas build without Buffered(1) support
        _SPEC_KWARGS_CACHE = {}
    return _SPEC_KWARGS_CACHE


def _const_spec(shape, grid_rank):
    """Full-array operand with a constant block index (single-buffered if possible)."""
    zeros = (0,) * len(shape)
    if grid_rank == 1:
        index_map = lambda b: zeros
    else:
        index_map = lambda b, q: zeros
    return pl.BlockSpec(shape, index_map, **_const_spec_kwargs())


# ----------------------------------------------------------------------------
# Kernel 1: embeddings (word + position + token-type) + LayerNorm + mask bias
# ----------------------------------------------------------------------------
def embed_ln_kernel(we_ref, pe_ref, te_ref, g_ref, b_ref, m_ref, x_ref, bias_ref):
    x = we_ref[0] + pe_ref[...] + te_ref[...]                   # (S, H) f32
    x_ref[0] = _layer_norm(x, g_ref[...], b_ref[...])
    # Fused attention-mask -> additive bias (0 where attended, -10000 where masked).
    bias_ref[0] = (1.0 - m_ref[0].astype(jnp.float32)) * -10000.0


def embed_layernorm(word_emb_gathered, pos_emb, type_emb_row, gamma, beta, attn_mask_3d):
    B, S, H = word_emb_gathered.shape
    return pl.pallas_call(
        embed_ln_kernel,
        out_shape=(jax.ShapeDtypeStruct((B, S, H), jnp.float32),
                   jax.ShapeDtypeStruct((B, 1, S), jnp.float32)),
        grid=(B,),
        in_specs=[
            pl.BlockSpec((1, S, H), lambda b: (b, 0, 0)),   # gathered word embeddings
            _const_spec((S, H), 1),                         # position embeddings
            _const_spec((1, H), 1),                         # token-type (type-0) row
            _const_spec((1, H), 1),                         # LN gamma
            _const_spec((1, H), 1),                         # LN beta
            pl.BlockSpec((1, 1, S), lambda b: (b, 0, 0)),   # attention mask (int32)
        ],
        out_specs=(pl.BlockSpec((1, S, H), lambda b: (b, 0, 0)),
                   pl.BlockSpec((1, 1, S), lambda b: (b, 0, 0))),
        compiler_params=pltpu.CompilerParams(
            dimension_semantics=("parallel",),
            vmem_limit_bytes=_vmem_limit_bytes()),
    )(word_emb_gathered, pos_emb, type_emb_row, gamma, beta, attn_mask_3d)


# ----------------------------------------------------------------------------
# Kernel 2: one BERT encoder layer, tiled over q (MHA + FFN + 2 residual LNs)
# ----------------------------------------------------------------------------
def encoder_layer_kernel(x_tile_ref, x_full_ref, bias_ref,
                         wq_ref, bq_ref, wk_ref, bk_ref, wv_ref, bv_ref,
                         wo_ref, bo_ref, ln1_g_ref, ln1_b_ref,
                         w1_ref, fb1_ref, w2_ref, fb2_ref, ln2_g_ref, ln2_b_ref,
                         o_ref, k_scr, v_scr):
    nh, _, hd = wq_ref.shape                   # head-major weight slab (nh, H, hd)
    qi = pl.program_id(1)

    # --- K/V for the full sequence: computed once per batch row (first q-tile),
    #     written head-by-head straight into bf16 VMEM scratch (bounded live set),
    #     then reused across all q-tiles of this batch row. ---------------------
    @pl.when(qi == 0)
    def _():
        xf = x_full_ref[0].astype(jnp.bfloat16)                 # (S, H)
        for h in range(nh):                                     # static unroll, nh small
            kh = jnp.dot(xf, wk_ref[h], preferred_element_type=jnp.float32) + bk_ref[h]
            vh = jnp.dot(xf, wv_ref[h], preferred_element_type=jnp.float32) + bv_ref[h]
            k_scr[h] = kh.astype(jnp.bfloat16)
            v_scr[h] = vh.astype(jnp.bfloat16)

    x = x_tile_ref[0]                           # (tq, H) f32 q-tile of the activations
    bias = bias_ref[0]                          # (1, S)  f32 additive mask bias
    xb = x.astype(jnp.bfloat16)

    # --- Multi-head self-attention: per-head loop, only one (tq, S) score tile live
    #     at a time; output projection accumulated into a single (tq, H) value. ----
    acc = None
    for h in range(nh):
        # 1/sqrt(hd) is folded into wq/bq host-side.
        q_h = (jnp.dot(xb, wq_ref[h], preferred_element_type=jnp.float32)
               + bq_ref[h]).astype(jnp.bfloat16)                # (tq, hd)
        s = jnp.einsum("qd,kd->qk", q_h, k_scr[h],
                       preferred_element_type=jnp.float32)      # (tq, S), nt matmul
        s = s + bias
        m = jnp.max(s, axis=-1, keepdims=True)
        p = jnp.exp(s - m)
        p = p * pl.reciprocal(jnp.sum(p, axis=-1, keepdims=True), approx=True)
        ctx = jnp.dot(p.astype(jnp.bfloat16), v_scr[h],
                      preferred_element_type=jnp.float32)       # (tq, hd)
        contrib = jnp.dot(ctx.astype(jnp.bfloat16), wo_ref[h],
                          preferred_element_type=jnp.float32)   # (tq, H), full-width N
        acc = contrib if acc is None else acc + contrib
    attn = acc + bo_ref[...]

    x1 = _layer_norm(x + attn, ln1_g_ref[...], ln1_b_ref[...])

    # --- Feed-forward (per q-tile) --------------------------------------------------
    h1 = jnp.dot(x1.astype(jnp.bfloat16), w1_ref[...],
                 preferred_element_type=jnp.float32) + fb1_ref[...]
    h1 = _gelu_erf(h1)                                          # exact-GELU (erf), f32
    h2 = jnp.dot(h1.astype(jnp.bfloat16), w2_ref[...],
                 preferred_element_type=jnp.float32) + fb2_ref[...]
    o_ref[0] = _layer_norm(x1 + h2, ln2_g_ref[...], ln2_b_ref[...])


def _choose_q_tile(S):
    for t in (256, 128, 64, 32, 16, 8):
        if S % t == 0:
            return t
    return S  # full-S fallback (block equals full dim, always legal)


def encoder_layer(x, mask_bias, lp):
    B, S, H = x.shape
    nh, _, hd = lp["wq"].shape
    ffn_dim = lp["w1"].shape[1]
    tq = _choose_q_tile(S)
    n_q = S // tq

    in_specs = [
        pl.BlockSpec((1, tq, H), lambda b, q: (b, q, 0)),   # x (q-tile view)
        pl.BlockSpec((1, S, H), lambda b, q: (b, 0, 0)),    # x (full-S view for K/V)
        pl.BlockSpec((1, 1, S), lambda b, q: (b, 0, 0)),    # additive mask bias
        _const_spec((nh, H, hd), 2),   # wq (bf16, head-major, 1/sqrt(hd) folded in)
        _const_spec((nh, 1, hd), 2),   # bq (scaled)
        _const_spec((nh, H, hd), 2),   # wk
        _const_spec((nh, 1, hd), 2),   # bk
        _const_spec((nh, H, hd), 2),   # wv
        _const_spec((nh, 1, hd), 2),   # bv
        _const_spec((nh, hd, H), 2),   # wo (bf16, head-major)
        _const_spec((1, H), 2),        # bo
        _const_spec((1, H), 2),        # ln1 gamma
        _const_spec((1, H), 2),        # ln1 beta
        _const_spec((H, ffn_dim), 2),  # w1 (bf16)
        _const_spec((1, ffn_dim), 2),  # b1
        _const_spec((ffn_dim, H), 2),  # w2 (bf16)
        _const_spec((1, H), 2),        # b2
        _const_spec((1, H), 2),        # ln2 gamma
        _const_spec((1, H), 2),        # ln2 beta
    ]
    return pl.pallas_call(
        encoder_layer_kernel,
        out_shape=jax.ShapeDtypeStruct((B, S, H), jnp.float32),
        grid=(B, n_q),
        in_specs=in_specs,
        out_specs=pl.BlockSpec((1, tq, H), lambda b, q: (b, q, 0)),
        scratch_shapes=[pltpu.VMEM((nh, S, hd), jnp.bfloat16),   # K scratch
                        pltpu.VMEM((nh, S, hd), jnp.bfloat16)],  # V scratch
        compiler_params=pltpu.CompilerParams(
            dimension_semantics=("parallel", "arbitrary"),
            vmem_limit_bytes=_vmem_limit_bytes()),
    )(x, x, mask_bias,
      lp["wq"], lp["bq"], lp["wk"], lp["bk"], lp["wv"], lp["bv"],
      lp["wo"], lp["bo"], lp["ln1_g"], lp["ln1_b"],
      lp["w1"], lp["b1"], lp["w2"], lp["b2"], lp["ln2_g"], lp["ln2_b"])


# ----------------------------------------------------------------------------
# Parameters: canonical f32 "checkpoint" + one-time kernel-layout preparation
# ----------------------------------------------------------------------------
def init_bert_params(key, vocab, max_pos, hidden, intermediate, num_layers):
    keys = jax.random.split(key, 3 + num_layers)
    scale = 0.02
    # ContrastiveBERTModel.forward never passes token_type_ids -> HF uses all zeros,
    # so only the type-0 embedding row is ever used; a single (1, H) row is faithful.
    params = {
        "word_emb": scale * jax.random.normal(keys[0], (vocab, hidden), jnp.float32),
        "pos_emb": scale * jax.random.normal(keys[1], (max_pos, hidden), jnp.float32),
        "type_emb": scale * jax.random.normal(keys[2], (1, hidden), jnp.float32),
        "emb_ln_g": jnp.ones((1, hidden), jnp.float32),
        "emb_ln_b": jnp.zeros((1, hidden), jnp.float32),
        "layers": [],
    }
    for l in range(num_layers):
        lk = jax.random.split(keys[3 + l], 6)
        params["layers"].append({
            "wq": scale * jax.random.normal(lk[0], (hidden, hidden), jnp.float32),
            "bq": jnp.zeros((1, hidden), jnp.float32),
            "wk": scale * jax.random.normal(lk[1], (hidden, hidden), jnp.float32),
            "bk": jnp.zeros((1, hidden), jnp.float32),
            "wv": scale * jax.random.normal(lk[2], (hidden, hidden), jnp.float32),
            "bv": jnp.zeros((1, hidden), jnp.float32),
            "wo": scale * jax.random.normal(lk[3], (hidden, hidden), jnp.float32),
            "bo": jnp.zeros((1, hidden), jnp.float32),
            "ln1_g": jnp.ones((1, hidden), jnp.float32),
            "ln1_b": jnp.zeros((1, hidden), jnp.float32),
            "w1": scale * jax.random.normal(lk[4], (hidden, intermediate), jnp.float32),
            "b1": jnp.zeros((1, intermediate), jnp.float32),
            "w2": scale * jax.random.normal(lk[5], (intermediate, hidden), jnp.float32),
            "b2": jnp.zeros((1, hidden), jnp.float32),
            "ln2_g": jnp.ones((1, hidden), jnp.float32),
            "ln2_b": jnp.zeros((1, hidden), jnp.float32),
        })
    return params


def prepare_kernel_params(params, num_heads):
    """One-time layout plumbing: bf16 weights, head-major slabs, 1/sqrt(hd) folded."""
    H = params["word_emb"].shape[1]
    hd = H // num_heads
    scale = 1.0 / (hd ** 0.5)

    def head_major_in(w, s=1.0):   # (H, H) -> (nh, H, hd), bf16
        return (jnp.transpose(w.reshape(H, num_heads, hd), (1, 0, 2)) * s
                ).astype(jnp.bfloat16)

    def head_major_bias(b, s=1.0):  # (1, H) -> (nh, 1, hd), f32
        return (b * s).reshape(num_heads, 1, hd)

    out = {k: params[k] for k in
           ("word_emb", "pos_emb", "type_emb", "emb_ln_g", "emb_ln_b")}
    out["layers"] = []
    for lp in params["layers"]:
        out["layers"].append({
            "wq": head_major_in(lp["wq"], scale), "bq": head_major_bias(lp["bq"], scale),
            "wk": head_major_in(lp["wk"]), "bk": head_major_bias(lp["bk"]),
            "wv": head_major_in(lp["wv"]), "bv": head_major_bias(lp["bv"]),
            "wo": lp["wo"].reshape(num_heads, hd, H).astype(jnp.bfloat16),
            "bo": lp["bo"],
            "ln1_g": lp["ln1_g"], "ln1_b": lp["ln1_b"],
            "w1": lp["w1"].astype(jnp.bfloat16), "b1": lp["b1"],
            "w2": lp["w2"].astype(jnp.bfloat16), "b2": lp["b2"],
            "ln2_g": lp["ln2_g"], "ln2_b": lp["ln2_b"],
        })
    return out


# ----------------------------------------------------------------------------
# ContrastiveBERTModel.forward: run BERT, return last_hidden_state[:, 0, :]
# ----------------------------------------------------------------------------
def contrastive_bert_forward(params, input_ids, attention_mask):
    word = jnp.take(params["word_emb"], input_ids, axis=0)      # (B, S, H) gather (XLA)
    S = input_ids.shape[1]
    pos = params["pos_emb"][:S]
    mask3 = attention_mask.astype(jnp.int32)[:, None, :]        # (B, 1, S)
    x, mask_bias = embed_layernorm(word, pos, params["type_emb"],
                                   params["emb_ln_g"], params["emb_ln_b"], mask3)
    for layer in params["layers"]:
        x = encoder_layer(x, mask_bias, layer)
    return x[:, 0, :]                                           # CLS embedding


# ----------------------------------------------------------------------------
# Pure-JAX (f32, XLA) reference for validation
# ----------------------------------------------------------------------------
def reference_forward(params, input_ids, attention_mask, num_heads):
    word = jnp.take(params["word_emb"], input_ids, axis=0)
    S = input_ids.shape[1]
    x = _layer_norm(word + params["pos_emb"][:S] + params["type_emb"],
                    params["emb_ln_g"], params["emb_ln_b"])
    bias = ((1.0 - attention_mask.astype(jnp.float32)) * -10000.0)[:, None, :]
    B, _, H = x.shape
    hd = H // num_heads

    def split(t):
        return t.reshape(B, S, num_heads, hd).transpose(0, 2, 1, 3)

    for lp in params["layers"]:
        q, k, v = (x @ lp["wq"] + lp["bq"], x @ lp["wk"] + lp["bk"],
                   x @ lp["wv"] + lp["bv"])
        s = jnp.einsum("bhqd,bhkd->bhqk", split(q), split(k)) / (hd ** 0.5)
        s = s + bias[:, None, :, :]
        p = jax.nn.softmax(s, axis=-1)
        ctx = jnp.einsum("bhqk,bhkd->bhqd", p, split(v))
        ctx = ctx.transpose(0, 2, 1, 3).reshape(B, S, H)
        x = _layer_norm(x + ctx @ lp["wo"] + lp["bo"], lp["ln1_g"], lp["ln1_b"])
        h1 = jax.nn.gelu(x @ lp["w1"] + lp["b1"], approximate=False)
        x = _layer_norm(x + h1 @ lp["w2"] + lp["b2"], lp["ln2_g"], lp["ln2_b"])
    return x[:, 0, :]


if __name__ == "__main__":
    # Small BERT config consistent with the module's forward.
    VOCAB, MAX_POS = 100, 8
    B, S, H, NH, FFN, L = 2, 8, 32, 2, 64, 2

    key = jax.random.PRNGKey(0)
    pkey, ikey = jax.random.split(key)
    params_f32 = init_bert_params(pkey, VOCAB, MAX_POS, H, FFN, L)
    kparams = prepare_kernel_params(params_f32, NH)

    input_ids = jax.random.randint(ikey, (B, S), 0, VOCAB, dtype=jnp.int32)
    attention_mask = jnp.array(
        [[1, 1, 1, 1, 1, 1, 1, 1],
         [1, 1, 1, 1, 1, 1, 0, 0]], dtype=jnp.int32)

    _const_spec_kwargs()   # run the single-buffering probe eagerly (outside jit tracing)
    _vmem_limit_bytes()    # resolve the per-generation VMEM limit eagerly
    forward = jax.jit(contrastive_bert_forward)

    cls = forward(kparams, input_ids, attention_mask)
    cls = jax.block_until_ready(cls)

    ref = reference_forward(params_f32, input_ids, attention_mask, NH)
    max_err = float(jnp.max(jnp.abs(cls - ref)))

    assert cls.shape == (B, H) and cls.dtype == jnp.float32
    assert bool(jnp.all(jnp.isfinite(cls)))
    assert max_err < 5e-2, f"kernel vs f32 reference mismatch: {max_err}"
    print("KERNEL_OK")
</pallas_src>

<mosaic_0001>
module attributes {stable_mosaic.version = 11 : i64} {
  func.func @_probe(%arg0: i32, %arg1: memref<8x128xf32, #tpu.memory_space<vmem>>, %arg2: memref<8x128xf32, #tpu.memory_space<vmem>>) attributes {dimension_semantics = [#tpu.dimension_semantics<arbitrary>], iteration_bounds = array<i64: 2>, scalar_prefetch = 0 : i64, scratch_operands = 0 : i64, tpu.core_type = #tpu.core_type<tc>, window_params = [{pipeline_mode = #tpu.pipeline_mode<synchronous>, transform_indices = @transform_0, window_bounds = array<i64: 8, 128>}, {pipeline_mode = #tpu.pipeline_mode<synchronous>, transform_indices = @transform_1, window_bounds = array<i64: 8, 128>}]} {
    %c0 = arith.constant 0 : index
    %c0_0 = arith.constant 0 : index
    %0 = vector.load %arg1[%c0, %c0_0] : memref<8x128xf32, #tpu.memory_space<vmem>>, vector<8x128xf32>
    %cst = arith.constant 1.000000e+00 : f32
    %1 = vector.broadcast %cst : f32 to vector<8x128xf32>
    %2 = arith.addf %0, %1 : vector<8x128xf32>
    %c0_1 = arith.constant 0 : index
    %c0_2 = arith.constant 0 : index
    %3 = vector.load %arg2[%c0_1, %c0_2] : memref<8x128xf32, #tpu.memory_space<vmem>>, vector<8x128xf32>
    tpu.vector_store %arg2[%c0_1, %c0_2], %2 {strides = array<i32>} : memref<8x128xf32, #tpu.memory_space<vmem>>, vector<8x128xf32>,
    return
  }
  func.func @transform_0(%arg0: i32) -> (i32, i32) {
    %c0_i32 = arith.constant 0 : i32
    %c0_i32_0 = arith.constant 0 : i32
    %c0_i32_1 = arith.constant 0 : i32
    return %c0_i32, %c0_i32_0 : i32, i32
  }
  func.func @transform_1(%arg0: i32) -> (i32, i32) {
    %c0_i32 = arith.constant 0 : i32
    %c0_i32_0 = arith.constant 0 : i32
    %c0_i32_1 = arith.constant 0 : i32
    return %c0_i32, %c0_i32_0 : i32, i32
  }
}

module attributes {stable_mosaic.version = 11 : i64} {
  func.func @embed_ln_kernel(%arg0: i32, %arg1: memref<1x8x32xf32, #tpu.memory_space<vmem>>, %arg2: memref<8x32xf32, #tpu.memory_space<vmem>>, %arg3: memref<1x32xf32, #tpu.memory_space<vmem>>, %arg4: memref<1x32xf32, #tpu.memory_space<vmem>>, %arg5: memref<1x32xf32, #tpu.memory_space<vmem>>, %arg6: memref<1x1x8xi32, #tpu.memory_space<vmem>>, %arg7: memref<1x8x32xf32, #tpu.memory_space<vmem>>, %arg8: memref<1x1x8xf32, #tpu.memory_space<vmem>>) attributes {dimension_semantics = [#tpu.dimension_semantics<parallel>], iteration_bounds = array<i64: 2>, scalar_prefetch = 0 : i64, scratch_operands = 0 : i64, tpu.core_type = #tpu.core_type<tc>, window_params = [{transform_indices = @transform_0, window_bounds = array<i64: 1, 8, 32>}, {pipeline_mode = #tpu.pipeline_mode<synchronous>, transform_indices = @transform_1, window_bounds = array<i64: 8, 32>}, {pipeline_mode = #tpu.pipeline_mode<synchronous>, transform_indices = @transform_2, window_bounds = array<i64: 1, 32>}, {pipeline_mode = #tpu.pipeline_mode<synchronous>, transform_indices = @transform_3, window_bounds = array<i64: 1, 32>}, {pipeline_mode = #tpu.pipeline_mode<synchronous>, transform_indices = @transform_4, window_bounds = array<i64: 1, 32>}, {transform_indices = @transform_5, window_bounds = array<i64: 1, 1, 8>}, {transform_indices = @transform_6, window_bounds = array<i64: 1, 8, 32>}, {transform_indices = @transform_7, window_bounds = array<i64: 1, 1, 8>}]} {
    %c0 = arith.constant 0 : index
    %c0_0 = arith.constant 0 : index
    %c0_1 = arith.constant 0 : index
    %0 = vector.load %arg1[%c0, %c0_0, %c0_1] : memref<1x8x32xf32, #tpu.memory_space<vmem>>, vector<1x8x32xf32>
    %1 = vector.shape_cast %0 : vector<1x8x32xf32> to vector<8x32xf32>
    %c0_2 = arith.constant 0 : index
    %c0_3 = arith.constant 0 : index
    %2 = vector.load %arg2[%c0_2, %c0_3] : memref<8x32xf32, #tpu.memory_space<vmem>>, vector<8x32xf32>
    %3 = arith.addf %1, %2 : vector<8x32xf32>
    %c0_4 = arith.constant 0 : index
    %c0_5 = arith.constant 0 : index
    %4 = vector.load %arg3[%c0_4, %c0_5] : memref<1x32xf32, #tpu.memory_space<vmem>>, vector<1x32xf32>
    %5 = vector.broadcast %4 : vector<1x32xf32> to vector<8x32xf32>
    %6 = arith.addf %3, %5 : vector<8x32xf32>
    %c0_6 = arith.constant 0 : index
    %c0_7 = arith.constant 0 : index
    %7 = vector.load %arg4[%c0_6, %c0_7] : memref<1x32xf32, #tpu.memory_space<vmem>>, vector<1x32xf32>
    %c0_8 = arith.constant 0 : index
    %c0_9 = arith.constant 0 : index
    %8 = vector.load %arg5[%c0_8, %c0_9] : memref<1x32xf32, #tpu.memory_space<vmem>>, vector<1x32xf32>
    %cst = arith.constant dense<0.000000e+00> : vector<8xf32>
    %9 = vector.multi_reduction <add>, %6, %cst [1] : vector<8x32xf32> to vector<8xf32>
    %10 = vector.shape_cast %9 : vector<8xf32> to vector<8x1xf32>
    %cst_10 = arith.constant 3.200000e+01 : f32
    %11 = vector.broadcast %cst_10 : f32 to vector<8x1xf32>
    %12 = arith.divf %10, %11 : vector<8x1xf32>
    %13 = vector.broadcast %12 : vector<8x1xf32> to vector<8x32xf32>
    %14 = arith.subf %6, %13 : vector<8x32xf32>
    %15 = arith.mulf %14, %14 : vector<8x32xf32>
    %cst_11 = arith.constant dense<0.000000e+00> : vector<8xf32>
    %16 = vector.multi_reduction <add>, %15, %cst_11 [1] : vector<8x32xf32> to vector<8xf32>
    %17 = vector.shape_cast %16 : vector<8xf32> to vector<8x1xf32>
    %cst_12 = arith.constant 3.200000e+01 : f32
    %18 = vector.broadcast %cst_12 : f32 to vector<8x1xf32>
    %19 = arith.divf %17, %18 : vector<8x1xf32>
    %20 = vector.broadcast %12 : vector<8x1xf32> to vector<8x32xf32>
    %21 = arith.subf %6, %20 : vector<8x32xf32>
    %cst_13 = arith.constant 9.99999996E-13 : f32
    %22 = vector.broadcast %cst_13 : f32 to vector<8x1xf32>
    %23 = arith.addf %19, %22 : vector<8x1xf32>
    %24 = math.rsqrt %23 : vector<8x1xf32>
    %25 = vector.broadcast %24 : vector<8x1xf32> to vector<8x32xf32>
    %26 = arith.mulf %21, %25 : vector<8x32xf32>
    %27 = vector.broadcast %7 : vector<1x32xf32> to vector<8x32xf32>
    %28 = arith.mulf %26, %27 : vector<8x32xf32>
    %29 = vector.broadcast %8 : vector<1x32xf32> to vector<8x32xf32>
    %30 = arith.addf %28, %29 : vector<8x32xf32>
    %c0_14 = arith.constant 0 : index
    %c0_15 = arith.constant 0 : index
    %c0_16 = arith.constant 0 : index
    %31 = vector.load %arg7[%c0_14, %c0_15, %c0_16] : memref<1x8x32xf32, #tpu.memory_space<vmem>>, vector<1x8x32xf32>
    %32 = vector.shape_cast %31 : vector<1x8x32xf32> to vector<8x32xf32>
    %33 = vector.shape_cast %30 : vector<8x32xf32> to vector<1x8x32xf32>
    tpu.vector_store %arg7[%c0_14, %c0_15, %c0_16], %33 {strides = array<i32>} : memref<1x8x32xf32, #tpu.memory_space<vmem>>, vector<1x8x32xf32>,
    %c0_17 = arith.constant 0 : index
    %c0_18 = arith.constant 0 : index
    %c0_19 = arith.constant 0 : index
    %34 = vector.load %arg6[%c0_17, %c0_18, %c0_19] : memref<1x1x8xi32, #tpu.memory_space<vmem>>, vector<1x1x8xi32>
    %35 = vector.shape_cast %34 : vector<1x1x8xi32> to vector<1x8xi32>
    %36 = arith.sitofp %35 : vector<1x8xi32> to vector<1x8xf32>
    %cst_20 = arith.constant 1.000000e+00 : f32
    %37 = vector.broadcast %cst_20 : f32 to vector<1x8xf32>
    %38 = arith.subf %37, %36 : vector<1x8xf32>
    %cst_21 = arith.constant -1.000000e+04 : f32
    %39 = vector.broadcast %cst_21 : f32 to vector<1x8xf32>
    %40 = arith.mulf %38, %39 : vector<1x8xf32>
    %c0_22 = arith.constant 0 : index
    %c0_23 = arith.constant 0 : index
    %c0_24 = arith.constant 0 : index
    %41 = vector.load %arg8[%c0_22, %c0_23, %c0_24] : memref<1x1x8xf32, #tpu.memory_space<vmem>>, vector<1x1x8xf32>
    %42 = vector.shape_cast %41 : vector<1x1x8xf32> to vector<1x8xf32>
    %43 = vector.shape_cast %40 : vector<1x8xf32> to vector<1x1x8xf32>
    tpu.vector_store %arg8[%c0_22, %c0_23, %c0_24], %43 {strides = array<i32>} : memref<1x1x8xf32, #tpu.memory_space<vmem>>, vector<1x1x8xf32>,
    return
  }
  func.func @transform_0(%arg0: i32) -> (i32, i32, i32) {
    %c0_i32 = arith.constant 0 : i32
    %c0_i32_0 = arith.constant 0 : i32
    %c0_i32_1 = arith.constant 0 : i32
    return %arg0, %c0_i32, %c0_i32_0 : i32, i32, i32
  }
  func.func @transform_1(%arg0: i32) -> (i32, i32) {
    %c0_i32 = arith.constant 0 : i32
    %c0_i32_0 = arith.constant 0 : i32
    %c0_i32_1 = arith.constant 0 : i32
    return %c0_i32, %c0_i32_0 : i32, i32
  }
  func.func @transform_2(%arg0: i32) -> (i32, i32) {
    %c0_i32 = arith.constant 0 : i32
    %c0_i32_0 = arith.constant 0 : i32
    %c0_i32_1 = arith.constant 0 : i32
    return %c0_i32, %c0_i32_0 : i32, i32
  }
  func.func @transform_3(%arg0: i32) -> (i32, i32) {
    %c0_i32 = arith.constant 0 : i32
    %c0_i32_0 = arith.constant 0 : i32
    %c0_i32_1 = arith.constant 0 : i32
    return %c0_i32, %c0_i32_0 : i32, i32
  }
  func.func @transform_4(%arg0: i32) -> (i32, i32) {
    %c0_i32 = arith.constant 0 : i32
    %c0_i32_0 = arith.constant 0 : i32
    %c0_i32_1 = arith.constant 0 : i32
    return %c0_i32, %c0_i32_0 : i32, i32
  }
  func.func @transform_5(%arg0: i32) -> (i32, i32, i32) {
    %c0_i32 = arith.constant 0 : i32
    %c0_i32_0 = arith.constant 0 : i32
    %c0_i32_1 = arith.constant 0 : i32
    return %arg0, %c0_i32, %c0_i32_0 : i32, i32, i32
  }
  func.func @transform_6(%arg0: i32) -> (i32, i32, i32) {
    %c0_i32 = arith.constant 0 : i32
    %c0_i32_0 = arith.constant 0 : i32
    %c0_i32_1 = arith.constant 0 : i32
    return %arg0, %c0_i32, %c0_i32_0 : i32, i32, i32
  }
  func.func @transform_7(%arg0: i32) -> (i32, i32, i32) {
    %c0_i32 = arith.constant 0 : i32
    %c0_i32_0 = arith.constant 0 : i32
    %c0_i32_1 = arith.constant 0 : i32
    return %arg0, %c0_i32, %c0_i32_0 : i32, i32, i32
  }
}

module attributes {stable_mosaic.version = 11 : i64} {
  func.func @encoder_layer_kernel(%arg0: i32, %arg1: i32, %arg2: memref<1x8x32xf32, #tpu.memory_space<vmem>>, %arg3: memref<1x8x32xf32, #tpu.memory_space<vmem>>, %arg4: memref<1x1x8xf32, #tpu.memory_space<vmem>>, %arg5: memref<2x32x16xbf16, #tpu.memory_space<vmem>>, %arg6: memref<2x1x16xf32, #tpu.memory_space<vmem>>, %arg7: memref<2x32x16xbf16, #tpu.memory_space<vmem>>, %arg8: memref<2x1x16xf32, #tpu.memory_space<vmem>>, %arg9: memref<2x32x16xbf16, #tpu.memory_space<vmem>>, %arg10: memref<2x1x16xf32, #tpu.memory_space<vmem>>, %arg11: memref<2x16x32xbf16, #tpu.memory_space<vmem>>, %arg12: memref<1x32xf32, #tpu.memory_space<vmem>>, %arg13: memref<1x32xf32, #tpu.memory_space<vmem>>, %arg14: memref<1x32xf32, #tpu.memory_space<vmem>>, %arg15: memref<32x64xbf16, #tpu.memory_space<vmem>>, %arg16: memref<1x64xf32, #tpu.memory_space<vmem>>, %arg17: memref<64x32xbf16, #tpu.memory_space<vmem>>, %arg18: memref<1x32xf32, #tpu.memory_space<vmem>>, %arg19: memref<1x32xf32, #tpu.memory_space<vmem>>, %arg20: memref<1x32xf32, #tpu.memory_space<vmem>>, %arg21: memref<1x8x32xf32, #tpu.memory_space<vmem>>, %arg22: memref<2x8x16xbf16, #tpu.memory_space<vmem>>, %arg23: memref<2x8x16xbf16, #tpu.memory_space<vmem>>) attributes {dimension_semantics = [#tpu.dimension_semantics<parallel>, #tpu.dimension_semantics<arbitrary>], iteration_bounds = array<i64: 2, 1>, scalar_prefetch = 0 : i64, scratch_operands = 2 : i64, tpu.core_type = #tpu.core_type<tc>, window_params = [{transform_indices = @transform_0, window_bounds = array<i64: 1, 8, 32>}, {transform_indices = @transform_1, window_bounds = array<i64: 1, 8, 32>}, {transform_indices = @transform_2, window_bounds = array<i64: 1, 1, 8>}, {pipeline_mode = #tpu.pipeline_mode<synchronous>, transform_indices = @transform_3, window_bounds = array<i64: 2, 32, 16>}, {pipeline_mode = #tpu.pipeline_mode<synchronous>, transform_indices = @transform_4, window_bounds = array<i64: 2, 1, 16>}, {pipeline_mode = #tpu.pipeline_mode<synchronous>, transform_indices = @transform_5, window_bounds = array<i64: 2, 32, 16>}, {pipeline_mode = #tpu.pipeline_mode<synchronous>, transform_indices = @transform_6, window_bounds = array<i64: 2, 1, 16>}, {pipeline_mode = #tpu.pipeline_mode<synchronous>, transform_indices = @transform_7, window_bounds = array<i64: 2, 32, 16>}, {pipeline_mode = #tpu.pipeline_mode<synchronous>, transform_indices = @transform_8, window_bounds = array<i64: 2, 1, 16>}, {pipeline_mode = #tpu.pipeline_mode<synchronous>, transform_indices = @transform_9, window_bounds = array<i64: 2, 16, 32>}, {pipeline_mode = #tpu.pipeline_mode<synchronous>, transform_indices = @transform_10, window_bounds = array<i64: 1, 32>}, {pipeline_mode = #tpu.pipeline_mode<synchronous>, transform_indices = @transform_11, window_bounds = array<i64: 1, 32>}, {pipeline_mode = #tpu.pipeline_mode<synchronous>, transform_indices = @transform_12, window_bounds = array<i64: 1, 32>}, {pipeline_mode = #tpu.pipeline_mode<synchronous>, transform_indices = @transform_13, window_bounds = array<i64: 32, 64>}, {pipeline_mode = #tpu.pipeline_mode<synchronous>, transform_indices = @transform_14, window_bounds = array<i64: 1, 64>}, {pipeline_mode = #tpu.pipeline_mode<synchronous>, transform_indices = @transform_15, window_bounds = array<i64: 64, 32>}, {pipeline_mode = #tpu.pipeline_mode<synchronous>, transform_indices = @transform_16, window_bounds = array<i64: 1, 32>}, {pipeline_mode = #tpu.pipeline_mode<synchronous>, transform_indices = @transform_17, window_bounds = array<i64: 1, 32>}, {pipeline_mode = #tpu.pipeline_mode<synchronous>, transform_indices = @transform_18, window_bounds = array<i64: 1, 32>}, {transform_indices = @transform_19, window_bounds = array<i64: 1, 8, 32>}]} {
    %c0_i32 = arith.constant 0 : i32
    %0 = arith.cmpi eq, %arg1, %c0_i32 : i32
    %1 = arith.extui %0 : i1 to i32
    %c0_i32_0 = arith.constant 0 : i32
    %2 = arith.cmpi ne, %1, %c0_i32_0 : i32
    scf.if %2 {
      %c0_95 = arith.constant 0 : index
      %c0_96 = arith.constant 0 : index
      %c0_97 = arith.constant 0 : index
      %180 = vector.load %arg3[%c0_95, %c0_96, %c0_97] : memref<1x8x32xf32, #tpu.memory_space<vmem>>, vector<1x8x32xf32>
      %181 = vector.shape_cast %180 : vector<1x8x32xf32> to vector<8x32xf32>
      %182 = arith.truncf %181 : vector<8x32xf32> to vector<8x32xbf16>
      %c0_98 = arith.constant 0 : index
      %c0_99 = arith.constant 0 : index
      %c0_100 = arith.constant 0 : index
      %183 = vector.load %arg7[%c0_98, %c0_99, %c0_100] : memref<2x32x16xbf16, #tpu.memory_space<vmem>>, vector<1x32x16xbf16>
      %184 = vector.shape_cast %183 : vector<1x32x16xbf16> to vector<32x16xbf16>
      %cst_101 = arith.constant dense<0.000000e+00> : vector<8x16xf32>
      %185 = tpu.matmul %182, %184, %cst_101 {dimension_numbers = #tpu.dot_dimension_numbers<[1], [0], [0], [1], [0, 0, 1, 1], [], []>} : vector<8x32xbf16>, vector<32x16xbf16>, vector<8x16xf32> -> vector<8x16xf32>
      %c0_102 = arith.constant 0 : index
      %c0_103 = arith.constant 0 : index
      %c0_104 = arith.constant 0 : index
      %186 = vector.load %arg8[%c0_102, %c0_103, %c0_104] : memref<2x1x16xf32, #tpu.memory_space<vmem>>, vector<1x1x16xf32>
      %187 = vector.shape_cast %186 : vector<1x1x16xf32> to vector<1x16xf32>
      %188 = vector.broadcast %187 : vector<1x16xf32> to vector<8x16xf32>
      %189 = arith.addf %185, %188 : vector<8x16xf32>
      %c0_105 = arith.constant 0 : index
      %c0_106 = arith.constant 0 : index
      %c0_107 = arith.constant 0 : index
      %190 = vector.load %arg9[%c0_105, %c0_106, %c0_107] : memref<2x32x16xbf16, #tpu.memory_space<vmem>>, vector<1x32x16xbf16>
      %191 = vector.shape_cast %190 : vector<1x32x16xbf16> to vector<32x16xbf16>
      %cst_108 = arith.constant dense<0.000000e+00> : vector<8x16xf32>
      %192 = tpu.matmul %182, %191, %cst_108 {dimension_numbers = #tpu.dot_dimension_numbers<[1], [0], [0], [1], [0, 0, 1, 1], [], []>} : vector<8x32xbf16>, vector<32x16xbf16>, vector<8x16xf32> -> vector<8x16xf32>
      %c0_109 = arith.constant 0 : index
      %c0_110 = arith.constant 0 : index
      %c0_111 = arith.constant 0 : index
      %193 = vector.load %arg10[%c0_109, %c0_110, %c0_111] : memref<2x1x16xf32, #tpu.memory_space<vmem>>, vector<1x1x16xf32>
      %194 = vector.shape_cast %193 : vector<1x1x16xf32> to vector<1x16xf32>
      %195 = vector.broadcast %194 : vector<1x16xf32> to vector<8x16xf32>
      %196 = arith.addf %192, %195 : vector<8x16xf32>
      %197 = arith.truncf %189 : vector<8x16xf32> to vector<8x16xbf16>
      %c0_112 = arith.constant 0 : index
      %c0_113 = arith.constant 0 : index
      %c0_114 = arith.constant 0 : index
      %198 = vector.load %arg22[%c0_112, %c0_113, %c0_114] : memref<2x8x16xbf16, #tpu.memory_space<vmem>>, vector<1x8x16xbf16>
      %199 = vector.shape_cast %198 : vector<1x8x16xbf16> to vector<8x16xbf16>
      %200 = vector.shape_cast %197 : vector<8x16xbf16> to vector<1x8x16xbf16>
      tpu.vector_store %arg22[%c0_112, %c0_113, %c0_114], %200 {strides = array<i32>} : memref<2x8x16xbf16, #tpu.memory_space<vmem>>, vector<1x8x16xbf16>,
      %201 = arith.truncf %196 : vector<8x16xf32> to vector<8x16xbf16>
      %c0_115 = arith.constant 0 : index
      %c0_116 = arith.constant 0 : index
      %c0_117 = arith.constant 0 : index
      %202 = vector.load %arg23[%c0_115, %c0_116, %c0_117] : memref<2x8x16xbf16, #tpu.memory_space<vmem>>, vector<1x8x16xbf16>
      %203 = vector.shape_cast %202 : vector<1x8x16xbf16> to vector<8x16xbf16>
      %204 = vector.shape_cast %201 : vector<8x16xbf16> to vector<1x8x16xbf16>
      tpu.vector_store %arg23[%c0_115, %c0_116, %c0_117], %204 {strides = array<i32>} : memref<2x8x16xbf16, #tpu.memory_space<vmem>>, vector<1x8x16xbf16>,
      %c1_118 = arith.constant 1 : index
      %c0_119 = arith.constant 0 : index
      %c0_120 = arith.constant 0 : index
      %205 = vector.load %arg7[%c1_118, %c0_119, %c0_120] : memref<2x32x16xbf16, #tpu.memory_space<vmem>>, vector<1x32x16xbf16>
      %206 = vector.shape_cast %205 : vector<1x32x16xbf16> to vector<32x16xbf16>
      %cst_121 = arith.constant dense<0.000000e+00> : vector<8x16xf32>
      %207 = tpu.matmul %182, %206, %cst_121 {dimension_numbers = #tpu.dot_dimension_numbers<[1], [0], [0], [1], [0, 0, 1, 1], [], []>} : vector<8x32xbf16>, vector<32x16xbf16>, vector<8x16xf32> -> vector<8x16xf32>
      %c1_122 = arith.constant 1 : index
      %c0_123 = arith.constant 0 : index
      %c0_124 = arith.constant 0 : index
      %208 = vector.load %arg8[%c1_122, %c0_123, %c0_124] : memref<2x1x16xf32, #tpu.memory_space<vmem>>, vector<1x1x16xf32>
      %209 = vector.shape_cast %208 : vector<1x1x16xf32> to vector<1x16xf32>
      %210 = vector.broadcast %209 : vector<1x16xf32> to vector<8x16xf32>
      %211 = arith.addf %207, %210 : vector<8x16xf32>
      %c1_125 = arith.constant 1 : index
      %c0_126 = arith.constant 0 : index
      %c0_127 = arith.constant 0 : index
      %212 = vector.load %arg9[%c1_125, %c0_126, %c0_127] : memref<2x32x16xbf16, #tpu.memory_space<vmem>>, vector<1x32x16xbf16>
      %213 = vector.shape_cast %212 : vector<1x32x16xbf16> to vector<32x16xbf16>
      %cst_128 = arith.constant dense<0.000000e+00> : vector<8x16xf32>
      %214 = tpu.matmul %182, %213, %cst_128 {dimension_numbers = #tpu.dot_dimension_numbers<[1], [0], [0], [1], [0, 0, 1, 1], [], []>} : vector<8x32xbf16>, vector<32x16xbf16>, vector<8x16xf32> -> vector<8x16xf32>
      %c1_129 = arith.constant 1 : index
      %c0_130 = arith.constant 0 : index
      %c0_131 = arith.constant 0 : index
      %215 = vector.load %arg10[%c1_129, %c0_130, %c0_131] : memref<2x1x16xf32, #tpu.memory_space<vmem>>, vector<1x1x16xf32>
      %216 = vector.shape_cast %215 : vector<1x1x16xf32> to vector<1x16xf32>
      %217 = vector.broadcast %216 : vector<1x16xf32> to vector<8x16xf32>
      %218 = arith.addf %214, %217 : vector<8x16xf32>
      %219 = arith.truncf %211 : vector<8x16xf32> to vector<8x16xbf16>
      %c1_132 = arith.constant 1 : index
      %c0_133 = arith.constant 0 : index
      %c0_134 = arith.constant 0 : index
      %220 = vector.load %arg22[%c1_132, %c0_133, %c0_134] : memref<2x8x16xbf16, #tpu.memory_space<vmem>>, vector<1x8x16xbf16>
      %221 = vector.shape_cast %220 : vector<1x8x16xbf16> to vector<8x16xbf16>
      %222 = vector.shape_cast %219 : vector<8x16xbf16> to vector<1x8x16xbf16>
      tpu.vector_store %arg22[%c1_132, %c0_133, %c0_134], %222 {strides = array<i32>} : memref<2x8x16xbf16, #tpu.memory_space<vmem>>, vector<1x8x16xbf16>,
      %223 = arith.truncf %218 : vector<8x16xf32> to vector<8x16xbf16>
      %c1_135 = arith.constant 1 : index
      %c0_136 = arith.constant 0 : index
      %c0_137 = arith.constant 0 : index
      %224 = vector.load %arg23[%c1_135, %c0_136, %c0_137] : memref<2x8x16xbf16, #tpu.memory_space<vmem>>, vector<1x8x16xbf16>
      %225 = vector.shape_cast %224 : vector<1x8x16xbf16> to vector<8x16xbf16>
      %226 = vector.shape_cast %223 : vector<8x16xbf16> to vector<1x8x16xbf16>
      tpu.vector_store %arg23[%c1_135, %c0_136, %c0_137], %226 {strides = array<i32>} : memref<2x8x16xbf16, #tpu.memory_space<vmem>>, vector<1x8x16xbf16>,
    } else {
    }
    %c0 = arith.constant 0 : index
    %c0_1 = arith.constant 0 : index
    %c0_2 = arith.constant 0 : index
    %3 = vector.load %arg2[%c0, %c0_1, %c0_2] : memref<1x8x32xf32, #tpu.memory_space<vmem>>, vector<1x8x32xf32>
    %4 = vector.shape_cast %3 : vector<1x8x32xf32> to vector<8x32xf32>
    %c0_3 = arith.constant 0 : index
    %c0_4 = arith.constant 0 : index
    %c0_5 = arith.constant 0 : index
    %5 = vector.load %arg4[%c0_3, %c0_4, %c0_5] : memref<1x1x8xf32, #tpu.memory_space<vmem>>, vector<1x1x8xf32>
    %6 = vector.shape_cast %5 : vector<1x1x8xf32> to vector<1x8xf32>
    %7 = arith.truncf %4 : vector<8x32xf32> to vector<8x32xbf16>
    %c0_6 = arith.constant 0 : index
    %c0_7 = arith.constant 0 : index
    %c0_8 = arith.constant 0 : index
    %8 = vector.load %arg5[%c0_6, %c0_7, %c0_8] : memref<2x32x16xbf16, #tpu.memory_space<vmem>>, vector<1x32x16xbf16>
    %9 = vector.shape_cast %8 : vector<1x32x16xbf16> to vector<32x16xbf16>
    %cst = arith.constant dense<0.000000e+00> : vector<8x16xf32>
    %10 = tpu.matmul %7, %9, %cst {dimension_numbers = #tpu.dot_dimension_numbers<[1], [0], [0], [1], [0, 0, 1, 1], [], []>} : vector<8x32xbf16>, vector<32x16xbf16>, vector<8x16xf32> -> vector<8x16xf32>
    %c0_9 = arith.constant 0 : index
    %c0_10 = arith.constant 0 : index
    %c0_11 = arith.constant 0 : index
    %11 = vector.load %arg6[%c0_9, %c0_10, %c0_11] : memref<2x1x16xf32, #tpu.memory_space<vmem>>, vector<1x1x16xf32>
    %12 = vector.shape_cast %11 : vector<1x1x16xf32> to vector<1x16xf32>
    %13 = vector.broadcast %12 : vector<1x16xf32> to vector<8x16xf32>
    %14 = arith.addf %10, %13 : vector<8x16xf32>
    %15 = arith.truncf %14 : vector<8x16xf32> to vector<8x16xbf16>
    %c0_12 = arith.constant 0 : index
    %c0_13 = arith.constant 0 : index
    %c0_14 = arith.constant 0 : index
    %16 = vector.load %arg22[%c0_12, %c0_13, %c0_14] : memref<2x8x16xbf16, #tpu.memory_space<vmem>>, vector<1x8x16xbf16>
    %17 = vector.shape_cast %16 : vector<1x8x16xbf16> to vector<8x16xbf16>
    "tpu.trace_start"() <{level = 10 : i32, message = "qd,kd->qk"}> : () -> ()
    %cst_15 = arith.constant dense<0.000000e+00> : vector<8x8xf32>
    %18 = tpu.matmul %15, %17, %cst_15 {dimension_numbers = #tpu.dot_dimension_numbers<[1], [1], [0], [0], [0, 0, 1, 0], [], []>} : vector<8x16xbf16>, vector<8x16xbf16>, vector<8x8xf32> -> vector<8x8xf32>
    "tpu.trace_stop"() : () -> ()
    %19 = vector.broadcast %6 : vector<1x8xf32> to vector<8x8xf32>
    %20 = arith.addf %18, %19 : vector<8x8xf32>
    %cst_16 = arith.constant dense<0xFF800000> : vector<8xf32>
    %21 = vector.multi_reduction <maximumf>, %20, %cst_16 [1] : vector<8x8xf32> to vector<8xf32>
    %22 = vector.shape_cast %21 : vector<8xf32> to vector<8x1xf32>
    %23 = vector.broadcast %22 : vector<8x1xf32> to vector<8x8xf32>
    %24 = arith.subf %20, %23 : vector<8x8xf32>
    %25 = math.exp %24 : vector<8x8xf32>
    %cst_17 = arith.constant dense<0.000000e+00> : vector<8xf32>
    %26 = vector.multi_reduction <add>, %25, %cst_17 [1] : vector<8x8xf32> to vector<8xf32>
    %27 = vector.shape_cast %26 : vector<8xf32> to vector<8x1xf32>
    %28 = tpu.reciprocal %27 {approx = true} : vector<8x1xf32> -> vector<8x1xf32>
    %29 = vector.broadcast %28 : vector<8x1xf32> to vector<8x8xf32>
    %30 = arith.mulf %25, %29 : vector<8x8xf32>
    %31 = arith.truncf %30 : vector<8x8xf32> to vector<8x8xbf16>
    %c0_18 = arith.constant 0 : index
    %c0_19 = arith.constant 0 : index
    %c0_20 = arith.constant 0 : index
    %32 = vector.load %arg23[%c0_18, %c0_19, %c0_20] : memref<2x8x16xbf16, #tpu.memory_space<vmem>>, vector<1x8x16xbf16>
    %33 = vector.shape_cast %32 : vector<1x8x16xbf16> to vector<8x16xbf16>
    %cst_21 = arith.constant dense<0.000000e+00> : vector<8x16xf32>
    %34 = tpu.matmul %31, %33, %cst_21 {dimension_numbers = #tpu.dot_dimension_numbers<[1], [0], [0], [1], [0, 0, 1, 1], [], []>} : vector<8x8xbf16>, vector<8x16xbf16>, vector<8x16xf32> -> vector<8x16xf32>
    %35 = arith.truncf %34 : vector<8x16xf32> to vector<8x16xbf16>
    %c0_22 = arith.constant 0 : index
    %c0_23 = arith.constant 0 : index
    %c0_24 = arith.constant 0 : index
    %36 = vector.load %arg11[%c0_22, %c0_23, %c0_24] : memref<2x16x32xbf16, #tpu.memory_space<vmem>>, vector<1x16x32xbf16>
    %37 = vector.shape_cast %36 : vector<1x16x32xbf16> to vector<16x32xbf16>
    %cst_25 = arith.constant dense<0.000000e+00> : vector<8x32xf32>
    %38 = tpu.matmul %35, %37, %cst_25 {dimension_numbers = #tpu.dot_dimension_numbers<[1], [0], [0], [1], [0, 0, 1, 1], [], []>} : vector<8x16xbf16>, vector<16x32xbf16>, vector<8x32xf32> -> vector<8x32xf32>
    %c1 = arith.constant 1 : index
    %c0_26 = arith.constant 0 : index
    %c0_27 = arith.constant 0 : index
    %39 = vector.load %arg5[%c1, %c0_26, %c0_27] : memref<2x32x16xbf16, #tpu.memory_space<vmem>>, vector<1x32x16xbf16>
    %40 = vector.shape_cast %39 : vector<1x32x16xbf16> to vector<32x16xbf16>
    %cst_28 = arith.constant dense<0.000000e+00> : vector<8x16xf32>
    %41 = tpu.matmul %7, %40, %cst_28 {dimension_numbers = #tpu.dot_dimension_numbers<[1], [0], [0], [1], [0, 0, 1, 1], [], []>} : vector<8x32xbf16>, vector<32x16xbf16>, vector<8x16xf32> -> vector<8x16xf32>
    %c1_29 = arith.constant 1 : index
    %c0_30 = arith.constant 0 : index
    %c0_31 = arith.constant 0 : index
    %42 = vector.load %arg6[%c1_29, %c0_30, %c0_31] : memref<2x1x16xf32, #tpu.memory_space<vmem>>, vector<1x1x16xf32>
    %43 = vector.shape_cast %42 : vector<1x1x16xf32> to vector<1x16xf32>
    %44 = vector.broadcast %43 : vector<1x16xf32> to vector<8x16xf32>
    %45 = arith.addf %41, %44 : vector<8x16xf32>
    %46 = arith.truncf %45 : vector<8x16xf32> to vector<8x16xbf16>
    %c1_32 = arith.constant 1 : index
    %c0_33 = arith.constant 0 : index
    %c0_34 = arith.constant 0 : index
    %47 = vector.load %arg22[%c1_32, %c0_33, %c0_34] : memref<2x8x16xbf16, #tpu.memory_space<vmem>>, vector<1x8x16xbf16>
    %48 = vector.shape_cast %47 : vector<1x8x16xbf16> to vector<8x16xbf16>
    "tpu.trace_start"() <{level = 10 : i32, message = "qd,kd->qk"}> : () -> ()
    %cst_35 = arith.constant dense<0.000000e+00> : vector<8x8xf32>
    %49 = tpu.matmul %46, %48, %cst_35 {dimension_numbers = #tpu.dot_dimension_numbers<[1], [1], [0], [0], [0, 0, 1, 0], [], []>} : vector<8x16xbf16>, vector<8x16xbf16>, vector<8x8xf32> -> vector<8x8xf32>
    "tpu.trace_stop"() : () -> ()
    %50 = vector.broadcast %6 : vector<1x8xf32> to vector<8x8xf32>
    %51 = arith.addf %49, %50 : vector<8x8xf32>
    %cst_36 = arith.constant dense<0xFF800000> : vector<8xf32>
    %52 = vector.multi_reduction <maximumf>, %51, %cst_36 [1] : vector<8x8xf32> to vector<8xf32>
    %53 = vector.shape_cast %52 : vector<8xf32> to vector<8x1xf32>
    %54 = vector.broadcast %53 : vector<8x1xf32> to vector<8x8xf32>
    %55 = arith.subf %51, %54 : vector<8x8xf32>
    %56 = math.exp %55 : vector<8x8xf32>
    %cst_37 = arith.constant dense<0.000000e+00> : vector<8xf32>
    %57 = vector.multi_reduction <add>, %56, %cst_37 [1] : vector<8x8xf32> to vector<8xf32>
    %58 = vector.shape_cast %57 : vector<8xf32> to vector<8x1xf32>
    %59 = tpu.reciprocal %58 {approx = true} : vector<8x1xf32> -> vector<8x1xf32>
    %60 = vector.broadcast %59 : vector<8x1xf32> to vector<8x8xf32>
    %61 = arith.mulf %56, %60 : vector<8x8xf32>
    %62 = arith.truncf %61 : vector<8x8xf32> to vector<8x8xbf16>
    %c1_38 = arith.constant 1 : index
    %c0_39 = arith.constant 0 : index
    %c0_40 = arith.constant 0 : index
    %63 = vector.load %arg23[%c1_38, %c0_39, %c0_40] : memref<2x8x16xbf16, #tpu.memory_space<vmem>>, vector<1x8x16xbf16>
    %64 = vector.shape_cast %63 : vector<1x8x16xbf16> to vector<8x16xbf16>
    %cst_41 = arith.constant dense<0.000000e+00> : vector<8x16xf32>
    %65 = tpu.matmul %62, %64, %cst_41 {dimension_numbers = #tpu.dot_dimension_numbers<[1], [0], [0], [1], [0, 0, 1, 1], [], []>} : vector<8x8xbf16>, vector<8x16xbf16>, vector<8x16xf32> -> vector<8x16xf32>
    %66 = arith.truncf %65 : vector<8x16xf32> to vector<8x16xbf16>
    %c1_42 = arith.constant 1 : index
    %c0_43 = arith.constant 0 : index
    %c0_44 = arith.constant 0 : index
    %67 = vector.load %arg11[%c1_42, %c0_43, %c0_44] : memref<2x16x32xbf16, #tpu.memory_space<vmem>>, vector<1x16x32xbf16>
    %68 = vector.shape_cast %67 : vector<1x16x32xbf16> to vector<16x32xbf16>
    %cst_45 = arith.constant dense<0.000000e+00> : vector<8x32xf32>
    %69 = tpu.matmul %66, %68, %cst_45 {dimension_numbers = #tpu.dot_dimension_numbers<[1], [0], [0], [1], [0, 0, 1, 1], [], []>} : vector<8x16xbf16>, vector<16x32xbf16>, vector<8x32xf32> -> vector<8x32xf32>
    %70 = arith.addf %38, %69 : vector<8x32xf32>
    %c0_46 = arith.constant 0 : index
    %c0_47 = arith.constant 0 : index
    %71 = vector.load %arg12[%c0_46, %c0_47] : memref<1x32xf32, #tpu.memory_space<vmem>>, vector<1x32xf32>
    %72 = vector.broadcast %71 : vector<1x32xf32> to vector<8x32xf32>
    %73 = arith.addf %70, %72 : vector<8x32xf32>
    %74 = arith.addf %4, %73 : vector<8x32xf32>
    %c0_48 = arith.constant 0 : index
    %c0_49 = arith.constant 0 : index
    %75 = vector.load %arg13[%c0_48, %c0_49] : memref<1x32xf32, #tpu.memory_space<vmem>>, vector<1x32xf32>
    %c0_50 = arith.constant 0 : index
    %c0_51 = arith.constant 0 : index
    %76 = vector.load %arg14[%c0_50, %c0_51] : memref<1x32xf32, #tpu.memory_space<vmem>>, vector<1x32xf32>
    %cst_52 = arith.constant dense<0.000000e+00> : vector<8xf32>
    %77 = vector.multi_reduction <add>, %74, %cst_52 [1] : vector<8x32xf32> to vector<8xf32>
    %78 = vector.shape_cast %77 : vector<8xf32> to vector<8x1xf32>
    %cst_53 = arith.constant 3.200000e+01 : f32
    %79 = vector.broadcast %cst_53 : f32 to vector<8x1xf32>
    %80 = arith.divf %78, %79 : vector<8x1xf32>
    %81 = vector.broadcast %80 : vector<8x1xf32> to vector<8x32xf32>
    %82 = arith.subf %74, %81 : vector<8x32xf32>
    %83 = arith.mulf %82, %82 : vector<8x32xf32>
    %cst_54 = arith.constant dense<0.000000e+00> : vector<8xf32>
    %84 = vector.multi_reduction <add>, %83, %cst_54 [1] : vector<8x32xf32> to vector<8xf32>
    %85 = vector.shape_cast %84 : vector<8xf32> to vector<8x1xf32>
    %cst_55 = arith.constant 3.200000e+01 : f32
    %86 = vector.broadcast %cst_55 : f32 to vector<8x1xf32>
    %87 = arith.divf %85, %86 : vector<8x1xf32>
    %88 = vector.broadcast %80 : vector<8x1xf32> to vector<8x32xf32>
    %89 = arith.subf %74, %88 : vector<8x32xf32>
    %cst_56 = arith.constant 9.99999996E-13 : f32
    %90 = vector.broadcast %cst_56 : f32 to vector<8x1xf32>
    %91 = arith.addf %87, %90 : vector<8x1xf32>
    %92 = math.rsqrt %91 : vector<8x1xf32>
    %93 = vector.broadcast %92 : vector<8x1xf32> to vector<8x32xf32>
    %94 = arith.mulf %89, %93 : vector<8x32xf32>
    %95 = vector.broadcast %75 : vector<1x32xf32> to vector<8x32xf32>
    %96 = arith.mulf %94, %95 : vector<8x32xf32>
    %97 = vector.broadcast %76 : vector<1x32xf32> to vector<8x32xf32>
    %98 = arith.addf %96, %97 : vector<8x32xf32>
    %99 = arith.truncf %98 : vector<8x32xf32> to vector<8x32xbf16>
    %c0_57 = arith.constant 0 : index
    %c0_58 = arith.constant 0 : index
    %100 = vector.load %arg15[%c0_57, %c0_58] : memref<32x64xbf16, #tpu.memory_space<vmem>>, vector<32x64xbf16>
    %cst_59 = arith.constant dense<0.000000e+00> : vector<8x64xf32>
    %101 = tpu.matmul %99, %100, %cst_59 {dimension_numbers = #tpu.dot_dimension_numbers<[1], [0], [0], [1], [0, 0, 1, 1], [], []>} : vector<8x32xbf16>, vector<32x64xbf16>, vector<8x64xf32> -> vector<8x64xf32>
    %c0_60 = arith.constant 0 : index
    %c0_61 = arith.constant 0 : index
    %102 = vector.load %arg16[%c0_60, %c0_61] : memref<1x64xf32, #tpu.memory_space<vmem>>, vector<1x64xf32>
    %103 = vector.broadcast %102 : vector<1x64xf32> to vector<8x64xf32>
    %104 = arith.addf %101, %103 : vector<8x64xf32>
    %cst_62 = arith.constant 5.000000e-01 : f32
    %105 = vector.broadcast %cst_62 : f32 to vector<8x64xf32>
    %106 = arith.mulf %105, %104 : vector<8x64xf32>
    %cst_63 = arith.constant 0.707106769 : f32
    %107 = vector.broadcast %cst_63 : f32 to vector<8x64xf32>
    %108 = arith.mulf %104, %107 : vector<8x64xf32>
    %cst_64 = arith.constant 0.000000e+00 : f32
    %109 = vector.broadcast %cst_64 : f32 to vector<8x64xf32>
    %110 = arith.cmpf olt, %108, %109 : vector<8x64xf32>
    %cst_65 = arith.constant -1.000000e+00 : f32
    %cst_66 = arith.constant 1.000000e+00 : f32
    %111 = vector.broadcast %cst_65 : f32 to vector<8x64xf32>
    %112 = vector.broadcast %cst_66 : f32 to vector<8x64xf32>
    %113 = arith.select %110, %111, %112 : vector<8x64xi1>, vector<8x64xf32>
    %114 = arith.mulf %108, %113 : vector<8x64xf32>
    %cst_67 = arith.constant 0.327591091 : f32
    %115 = vector.broadcast %cst_67 : f32 to vector<8x64xf32>
    %116 = arith.mulf %115, %114 : vector<8x64xf32>
    %cst_68 = arith.constant 1.000000e+00 : f32
    %117 = vector.broadcast %cst_68 : f32 to vector<8x64xf32>
    %118 = arith.addf %117, %116 : vector<8x64xf32>
    %cst_69 = arith.constant 1.000000e+00 : f32
    %119 = vector.broadcast %cst_69 : f32 to vector<8x64xf32>
    %120 = arith.divf %119, %118 : vector<8x64xf32>
    %cst_70 = arith.constant 1.06140542 : f32
    %121 = vector.broadcast %cst_70 : f32 to vector<8x64xf32>
    %122 = arith.mulf %121, %120 : vector<8x64xf32>
    %cst_71 = arith.constant -1.45315206 : f32
    %123 = vector.broadcast %cst_71 : f32 to vector<8x64xf32>
    %124 = arith.addf %122, %123 : vector<8x64xf32>
    %125 = arith.mulf %124, %120 : vector<8x64xf32>
    %cst_72 = arith.constant 1.42141378 : f32
    %126 = vector.broadcast %cst_72 : f32 to vector<8x64xf32>
    %127 = arith.addf %125, %126 : vector<8x64xf32>
    %128 = arith.mulf %127, %120 : vector<8x64xf32>
    %cst_73 = arith.constant -0.284496725 : f32
    %129 = vector.broadcast %cst_73 : f32 to vector<8x64xf32>
    %130 = arith.addf %128, %129 : vector<8x64xf32>
    %131 = arith.mulf %130, %120 : vector<8x64xf32>
    %cst_74 = arith.constant 0.254829586 : f32
    %132 = vector.broadcast %cst_74 : f32 to vector<8x64xf32>
    %133 = arith.addf %131, %132 : vector<8x64xf32>
    %134 = arith.mulf %133, %120 : vector<8x64xf32>
    %cst_75 = arith.constant 0.000000e+00 : f32
    %135 = vector.broadcast %cst_75 : f32 to vector<8x64xf32>
    %136 = arith.subf %135, %114 : vector<8x64xf32>
    %137 = arith.mulf %136, %114 : vector<8x64xf32>
    %138 = math.exp %137 : vector<8x64xf32>
    %139 = arith.mulf %134, %138 : vector<8x64xf32>
    %cst_76 = arith.constant 1.000000e+00 : f32
    %140 = vector.broadcast %cst_76 : f32 to vector<8x64xf32>
    %141 = arith.subf %140, %139 : vector<8x64xf32>
    %142 = arith.mulf %113, %141 : vector<8x64xf32>
    %cst_77 = arith.constant 1.000000e+00 : f32
    %143 = vector.broadcast %cst_77 : f32 to vector<8x64xf32>
    %144 = arith.addf %143, %142 : vector<8x64xf32>
    %145 = arith.mulf %106, %144 : vector<8x64xf32>
    %146 = arith.truncf %145 : vector<8x64xf32> to vector<8x64xbf16>
    %c0_78 = arith.constant 0 : index
    %c0_79 = arith.constant 0 : index
    %147 = vector.load %arg17[%c0_78, %c0_79] : memref<64x32xbf16, #tpu.memory_space<vmem>>, vector<64x32xbf16>
    %cst_80 = arith.constant dense<0.000000e+00> : vector<8x32xf32>
    %148 = tpu.matmul %146, %147, %cst_80 {dimension_numbers = #tpu.dot_dimension_numbers<[1], [0], [0], [1], [0, 0, 1, 1], [], []>} : vector<8x64xbf16>, vector<64x32xbf16>, vector<8x32xf32> -> vector<8x32xf32>
    %c0_81 = arith.constant 0 : index
    %c0_82 = arith.constant 0 : index
    %149 = vector.load %arg18[%c0_81, %c0_82] : memref<1x32xf32, #tpu.memory_space<vmem>>, vector<1x32xf32>
    %150 = vector.broadcast %149 : vector<1x32xf32> to vector<8x32xf32>
    %151 = arith.addf %148, %150 : vector<8x32xf32>
    %152 = arith.addf %98, %151 : vector<8x32xf32>
    %c0_83 = arith.constant 0 : index
    %c0_84 = arith.constant 0 : index
    %153 = vector.load %arg19[%c0_83, %c0_84] : memref<1x32xf32, #tpu.memory_space<vmem>>, vector<1x32xf32>
    %c0_85 = arith.constant 0 : index
    %c0_86 = arith.constant 0 : index
    %154 = vector.load %arg20[%c0_85, %c0_86] : memref<1x32xf32, #tpu.memory_space<vmem>>, vector<1x32xf32>
    %cst_87 = arith.constant dense<0.000000e+00> : vector<8xf32>
    %155 = vector.multi_reduction <add>, %152, %cst_87 [1] : vector<8x32xf32> to vector<8xf32>
    %156 = vector.shape_cast %155 : vector<8xf32> to vector<8x1xf32>
    %cst_88 = arith.constant 3.200000e+01 : f32
    %157 = vector.broadcast %cst_88 : f32 to vector<8x1xf32>
    %158 = arith.divf %156, %157 : vector<8x1xf32>
    %159 = vector.broadcast %158 : vector<8x1xf32> to vector<8x32xf32>
    %160 = arith.subf %152, %159 : vector<8x32xf32>
    %161 = arith.mulf %160, %160 : vector<8x32xf32>
    %cst_89 = arith.constant dense<0.000000e+00> : vector<8xf32>
    %162 = vector.multi_reduction <add>, %161, %cst_89 [1] : vector<8x32xf32> to vector<8xf32>
    %163 = vector.shape_cast %162 : vector<8xf32> to vector<8x1xf32>
    %cst_90 = arith.constant 3.200000e+01 : f32
    %164 = vector.broadcast %cst_90 : f32 to vector<8x1xf32>
    %165 = arith.divf %163, %164 : vector<8x1xf32>
    %166 = vector.broadcast %158 : vector<8x1xf32> to vector<8x32xf32>
    %167 = arith.subf %152, %166 : vector<8x32xf32>
    %cst_91 = arith.constant 9.99999996E-13 : f32
    %168 = vector.broadcast %cst_91 : f32 to vector<8x1xf32>
    %169 = arith.addf %165, %168 : vector<8x1xf32>
    %170 = math.rsqrt %169 : vector<8x1xf32>
    %171 = vector.broadcast %170 : vector<8x1xf32> to vector<8x32xf32>
    %172 = arith.mulf %167, %171 : vector<8x32xf32>
    %173 = vector.broadcast %153 : vector<1x32xf32> to vector<8x32xf32>
    %174 = arith.mulf %172, %173 : vector<8x32xf32>
    %175 = vector.broadcast %154 : vector<1x32xf32> to vector<8x32xf32>
    %176 = arith.addf %174, %175 : vector<8x32xf32>
    %c0_92 = arith.constant 0 : index
    %c0_93 = arith.constant 0 : index
    %c0_94 = arith.constant 0 : index
    %177 = vector.load %arg21[%c0_92, %c0_93, %c0_94] : memref<1x8x32xf32, #tpu.memory_space<vmem>>, vector<1x8x32xf32>
    %178 = vector.shape_cast %177 : vector<1x8x32xf32> to vector<8x32xf32>
    %179 = vector.shape_cast %176 : vector<8x32xf32> to vector<1x8x32xf32>
    tpu.vector_store %arg21[%c0_92, %c0_93, %c0_94], %179 {strides = array<i32>} : memref<1x8x32xf32, #tpu.memory_space<vmem>>, vector<1x8x32xf32>,
    return
  }
  func.func @transform_0(%arg0: i32, %arg1: i32) -> (i32, i32, i32) {
    %c0_i32 = arith.constant 0 : i32
    %c0_i32_0 = arith.constant 0 : i32
    return %arg0, %arg1, %c0_i32 : i32, i32, i32
  }
  func.func @transform_1(%arg0: i32, %arg1: i32) -> (i32, i32, i32) {
    %c0_i32 = arith.constant 0 : i32
    %c0_i32_0 = arith.constant 0 : i32
    %c0_i32_1 = arith.constant 0 : i32
    return %arg0, %c0_i32, %c0_i32_0 : i32, i32, i32
  }
  func.func @transform_2(%arg0: i32, %arg1: i32) -> (i32, i32, i32) {
    %c0_i32 = arith.constant 0 : i32
    %c0_i32_0 = arith.constant 0 : i32
    %c0_i32_1 = arith.constant 0 : i32
    return %arg0, %c0_i32, %c0_i32_0 : i32, i32, i32
  }
  func.func @transform_3(%arg0: i32, %arg1: i32) -> (i32, i32, i32) {
    %c0_i32 = arith.constant 0 : i32
    %c0_i32_0 = arith.constant 0 : i32
    %c0_i32_1 = arith.constant 0 : i32
    %c0_i32_2 = arith.constant 0 : i32
    return %c0_i32, %c0_i32_0, %c0_i32_1 : i32, i32, i32
  }
  func.func @transform_4(%arg0: i32, %arg1: i32) -> (i32, i32, i32) {
    %c0_i32 = arith.constant 0 : i32
    %c0_i32_0 = arith.constant 0 : i32
    %c0_i32_1 = arith.constant 0 : i32
    %c0_i32_2 = arith.constant 0 : i32
    return %c0_i32, %c0_i32_0, %c0_i32_1 : i32, i32, i32
  }
  func.func @transform_5(%arg0: i32, %arg1: i32) -> (i32, i32, i32) {
    %c0_i32 = arith.constant 0 : i32
    %c0_i32_0 = arith.constant 0 : i32
    %c0_i32_1 = arith.constant 0 : i32
    %c0_i32_2 = arith.constant 0 : i32
    return %c0_i32, %c0_i32_0, %c0_i32_1 : i32, i32, i32
  }
  func.func @transform_6(%arg0: i32, %arg1: i32) -> (i32, i32, i32) {
    %c0_i32 = arith.constant 0 : i32
    %c0_i32_0 = arith.constant 0 : i32
    %c0_i32_1 = arith.constant 0 : i32
    %c0_i32_2 = arith.constant 0 : i32
    return %c0_i32, %c0_i32_0, %c0_i32_1 : i32, i32, i32
  }
  func.func @transform_7(%arg0: i32, %arg1: i32) -> (i32, i32, i32) {
    %c0_i32 = arith.constant 0 : i32
    %c0_i32_0 = arith.constant 0 : i32
    %c0_i32_1 = arith.constant 0 : i32
    %c0_i32_2 = arith.constant 0 : i32
    return %c0_i32, %c0_i32_0, %c0_i32_1 : i32, i32, i32
  }
  func.func @transform_8(%arg0: i32, %arg1: i32) -> (i32, i32, i32) {
    %c0_i32 = arith.constant 0 : i32
    %c0_i32_0 = arith.constant 0 : i32
    %c0_i32_1 = arith.constant 0 : i32
    %c0_i32_2 = arith.constant 0 : i32
    return %c0_i32, %c0_i32_0, %c0_i32_1 : i32, i32, i32
  }
  func.func @transform_9(%arg0: i32, %arg1: i32) -> (i32, i32, i32) {
    %c0_i32 = arith.constant 0 : i32
    %c0_i32_0 = arith.constant 0 : i32
    %c0_i32_1 = arith.constant 0 : i32
    %c0_i32_2 = arith.constant 0 : i32
    return %c0_i32, %c0_i32_0, %c0_i32_1 : i32, i32, i32
  }
  func.func @transform_10(%arg0: i32, %arg1: i32) -> (i32, i32) {
    %c0_i32 = arith.constant 0 : i32
    %c0_i32_0 = arith.constant 0 : i32
    %c0_i32_1 = arith.constant 0 : i32
    return %c0_i32, %c0_i32_0 : i32, i32
  }
  func.func @transform_11(%arg0: i32, %arg1: i32) -> (i32, i32) {
    %c0_i32 = arith.constant 0 : i32
    %c0_i32_0 = arith.constant 0 : i32
    %c0_i32_1 = arith.constant 0 : i32
    return %c0_i32, %c0_i32_0 : i32, i32
  }
  func.func @transform_12(%arg0: i32, %arg1: i32) -> (i32, i32) {
    %c0_i32 = arith.constant 0 : i32
    %c0_i32_0 = arith.constant 0 : i32
    %c0_i32_1 = arith.constant 0 : i32
    return %c0_i32, %c0_i32_0 : i32, i32
  }
  func.func @transform_13(%arg0: i32, %arg1: i32) -> (i32, i32) {
    %c0_i32 = arith.constant 0 : i32
    %c0_i32_0 = arith.constant 0 : i32
    %c0_i32_1 = arith.constant 0 : i32
    return %c0_i32, %c0_i32_0 : i32, i32
  }
  func.func @transform_14(%arg0: i32, %arg1: i32) -> (i32, i32) {
    %c0_i32 = arith.constant 0 : i32
    %c0_i32_0 = arith.constant 0 : i32
    %c0_i32_1 = arith.constant 0 : i32
    return %c0_i32, %c0_i32_0 : i32, i32
  }
  func.func @transform_15(%arg0: i32, %arg1: i32) -> (i32, i32) {
    %c0_i32 = arith.constant 0 : i32
    %c0_i32_0 = arith.constant 0 : i32
    %c0_i32_1 = arith.constant 0 : i32
    return %c0_i32, %c0_i32_0 : i32, i32
  }
  func.func @transform_16(%arg0: i32, %arg1: i32) -> (i32, i32) {
    %c0_i32 = arith.constant 0 : i32
    %c0_i32_0 = arith.constant 0 : i32
    %c0_i32_1 = arith.constant 0 : i32
    return %c0_i32, %c0_i32_0 : i32, i32
  }
  func.func @transform_17(%arg0: i32, %arg1: i32) -> (i32, i32) {
    %c0_i32 = arith.constant 0 : i32
    %c0_i32_0 = arith.constant 0 : i32
    %c0_i32_1 = arith.constant 0 : i32
    return %c0_i32, %c0_i32_0 : i32, i32
  }
  func.func @transform_18(%arg0: i32, %arg1: i32) -> (i32, i32) {
    %c0_i32 = arith.constant 0 : i32
    %c0_i32_0 = arith.constant 0 : i32
    %c0_i32_1 = arith.constant 0 : i32
    return %c0_i32, %c0_i32_0 : i32, i32
  }
  func.func @transform_19(%arg0: i32, %arg1: i32) -> (i32, i32, i32) {
    %c0_i32 = arith.constant 0 : i32
    %c0_i32_0 = arith.constant 0 : i32
    return %arg0, %arg1, %c0_i32 : i32, i32, i32
  }
}

</mosaic_0001>

<llo_original>
// kernel: tpu_custom_call.1
$region0: #{tpu_custom_call.1}
  #allocation0 [shape = 'u32[]', space=smem, size = 0x4, offset = 0x4, fixed_abs, tag = 'smem constant byte address 0x4 - core index']
  #allocation1 [shape = 'u32[72,128]{1,0:T(1,128)}', space=vmem, size = 0x9000, scoped, tag = 'internal scratch']
  %s0 = inlined_call_operand.hbm [shape: f32[8,128], index: 0, kind: input, shape index: {}]
  %s1 = inlined_call_operand.hbm [shape: f32[8,128], index: 1, kind: output, shape index: {}]
  %s2 = sld [smem:[#allocation0]]
  $region41: #{tpu_custom_call.1} parent=0
    _
  %s4 = ssub.s32 1, %s2
  %s5 = scalar_select 0, %s4, %s2
  $region1: #{tpu_custom_call.1} parent=0
    #allocation2 [shape = 'u8[4096]{0}', space=vmem, size = 0x1000, scoped, tag = 'input window, operand 0, single buffered']
    #allocation3 [shape = 's32[2]{0}', space=sflag, size = 0x8, scoped, tag = 'scoped memory for tpu_custom_call.1']
    #allocation4 [shape = 's32[2]{0}', space=sflag, size = 0x8, scoped, tag = 'scoped memory for tpu_custom_call.1']
    #allocation5 [shape = 'u8[4096]{0}', space=vmem, size = 0x1000, scoped, tag = 'output window, operand 0, single buffered']
    %6 = vsyncpa [#allocation3], 0
    %7 = vsyncpa [#allocation4], 0
    loop: start=0, step=1, limit=4
    $region2: #{tpu_custom_call.1} parent=1 // loop_pre_header
      _
    $region3: #{tpu_custom_call.1} parent=1 // loop_header
      %s9 = sphi 0, %s13
      %p10 = scmp.ge.s32.totalorder %s9, 4
      %s17 = sphi 0, %s17
      %s19 = sphi 0, %s17
      %s20 = sphi 0, %s19
      %s34 = sphi 0, %s20
      %s38 = sphi 0, %s38
      %s40 = sphi 0, %s38
      %s41 = sphi 0, %s40
      %s55 = sphi 0, %s41
    $region4: #{tpu_custom_call.1} parent=1 // loop_header_branch
      %12 = sbr.rel (%p10) target = $region8
    $region5: #{tpu_custom_call.1} parent=1 // loop_body
      %s14 = ssub.s32 %s9, 1
      %s15 = ssub.s32 %s9, 2
      %s16 = sadd.s32 %s9, 1
      %s18 = sadd.s32 %s17, 1
      %p21 = scmp.eq.s32.totalorder %s9, 1
      %p22 = scmp.ne.s32.totalorder %s17, %s19
      %p23 = scmp.eq.s32.totalorder %s9, 0
      %p24 = por %p22, %p23
      %p25 = scmp.ne.s32.totalorder %s17, %s19
      %p26 = scmp.eq.s32.totalorder %s14, 1
      %p27 = por %p25, %p26
      %p28 = scmp.ne.s32.totalorder %s19, %s20
      %p29 = scmp.eq.s32.totalorder %s14, 0
      %p30 = por %p28, %p29
      %p31 = scmp.ne.s32.totalorder %s19, %s20
      %p32 = scmp.eq.s32.totalorder %s15, 1
      %p33 = por %p31, %p32
      %p35 = scmp.ne.s32.totalorder %s20, %s34
      %p36 = scmp.eq.s32.totalorder %s15, 0
      %p37 = por %p35, %p36
      %s39 = sadd.s32 %s38, 1
      %p42 = scmp.eq.s32.totalorder %s9, 1
      %p43 = scmp.ne.s32.totalorder %s38, %s40
      %p44 = scmp.eq.s32.totalorder %s9, 0
      %p45 = por %p43, %p44
      %p46 = scmp.ne.s32.totalorder %s38, %s40
      %p47 = scmp.eq.s32.totalorder %s14, 1
      %p48 = por %p46, %p47
      %p49 = scmp.ne.s32.totalorder %s40, %s41
      %p50 = scmp.eq.s32.totalorder %s14, 0
      %p51 = por %p49, %p50
      %p52 = scmp.ne.s32.totalorder %s40, %s41
      %p53 = scmp.eq.s32.totalorder %s15, 1
      %p54 = por %p52, %p53
      %p56 = scmp.ne.s32.totalorder %s41, %s55
      %p57 = scmp.eq.s32.totalorder %s15, 0
      %p58 = por %p56, %p57
      %p59 = scmp.le.s32.totalorder 1, %s9
      %p60 = scmp.lt.s32.totalorder %s9, 3
      %p61 = pnand %p59, %p60
      %p62 = pneg %p61
      // Predicated region
      $region9: #{tpu_custom_call.1} parent=5 // pred_check
        _
      $region10: #{tpu_custom_call.1} parent=5 // pred_check_branch
        %64 = sbr.rel (%p61) target = $region12
      $region11: #{tpu_custom_call.1} parent=5 // pred_region
        %s65 = ssub.s32 %s9, 1
        // Predicated region
        $region13: #{tpu_custom_call.1} parent=11 // pred_check
          %p66 = pneg %p30
        $region14: #{tpu_custom_call.1} parent=11 // pred_check_branch
          %68 = sbr.rel (%p66) target = $region16
        $region15: #{tpu_custom_call.1} parent=11 // pred_region
          %70 = vsyncadd [#allocation3], 0
          %s72 = sshll.u32 %s0, 4
          %s73 = int_to_ptr.hbm [resolvable:$true] %s72
          %s74 = sshll.u32 [#allocation2], 4
          %s75 = int_to_ptr.vmem [resolvable:$true] %s74
          %77 = dma.hbm_to_vmem [thread:$0]  %s73, 128, %s75, [#allocation3]
        $region16: #{tpu_custom_call.1} parent=11 // pred_fallthru
          _
      $region12: #{tpu_custom_call.1} parent=5 // pred_fallthru
        _
      %p78 = scmp.lt.s32.totalorder %s9, 2
      // Predicated region
      $region17: #{tpu_custom_call.1} parent=5 // pred_check
        %p79 = pneg %p78
      $region18: #{tpu_custom_call.1} parent=5 // pred_check_branch
        %81 = sbr.rel (%p79) target = $region20
      $region19: #{tpu_custom_call.1} parent=5 // pred_region
        _
      $region20: #{tpu_custom_call.1} parent=5 // pred_fallthru
        _
      %p82 = scmp.le.s32.totalorder 1, %s9
      %p83 = scmp.lt.s32.totalorder %s9, 3
      %p84 = pnand %p82, %p83
      %p85 = pneg %p84
      // Predicated region
      $region21: #{tpu_custom_call.1} parent=5 // pred_check
        _
      $region22: #{tpu_custom_call.1} parent=5 // pred_check_branch
        %87 = sbr.rel (%p84) target = $region24
      $region23: #{tpu_custom_call.1} parent=5 // pred_region
        %s88 = ssub.s32 %s9, 1
        // Predicated region
        $region25: #{tpu_custom_call.1} parent=23 // pred_check
          %p89 = pneg %p30
        $region26: #{tpu_custom_call.1} parent=23 // pred_check_branch
          %91 = sbr.rel (%p89) target = $region28
        $region27: #{tpu_custom_call.1} parent=23 // pred_region
          %93 = dma.done [#allocation3], 128
        $region28: #{tpu_custom_call.1} parent=23 // pred_fallthru
          _
        %p94 = pneg %p30
        %p95 = pneg %p27
        %p96 = pneg %p51
        %p97 = pneg %p48
        %v98 = vld [vmem:[#allocation2] sm:$0xff]
        %v99 = vadd.f32 %v98, 1.0
        %100 = vst [vmem:[#allocation5] sm:$0xff] %v99
        // Predicated region
        $region29: #{tpu_custom_call.1} parent=23 // pred_check
          %p101 = pneg %p48
        $region30: #{tpu_custom_call.1} parent=23 // pred_check_branch
          %103 = sbr.rel (%p101) target = $region32
        $region31: #{tpu_custom_call.1} parent=23 // pred_region
          %105 = vsyncadd [#allocation4], 0
          %s107 = sshll.u32 [#allocation5], 4
          %s108 = int_to_ptr.vmem [resolvable:$true] %s107
          %s109 = sshll.u32 %s1, 4
          %s110 = int_to_ptr.hbm [resolvable:$true] %s109
          %112 = dma.vmem_to_hbm [thread:$0]  %s108, 128, %s110, [#allocation4]
        $region32: #{tpu_custom_call.1} parent=23 // pred_fallthru
          _
        // Predicated region
        $region33: #{tpu_custom_call.1} parent=23 // pred_check
          %p113 = pneg %p48
        $region34: #{tpu_custom_call.1} parent=23 // pred_check_branch
          %115 = sbr.rel (%p113) target = $region36
        $region35: #{tpu_custom_call.1} parent=23 // pred_region
          %117 = dma.done [#allocation4], 128
        $region36: #{tpu_custom_call.1} parent=23 // pred_fallthru
          _
      $region24: #{tpu_custom_call.1} parent=5 // pred_fallthru
        _
      %p118 = scmp.le.s32.totalorder 2, %s9
      // Predicated region
      $region37: #{tpu_custom_call.1} parent=5 // pred_check
        %p119 = pneg %p118
      $region38: #{tpu_custom_call.1} parent=5 // pred_check_branch
        %121 = sbr.rel (%p119) target = $region40
      $region39: #{tpu_custom_call.1} parent=5 // pred_region
        %s122 = ssub.s32 %s9, 2
      $region40: #{tpu_custom_call.1} parent=5 // pred_fallthru
        _
    $region6: #{tpu_custom_call.1} parent=1 // loop_footer
      %s13 = sadd.s32 1, %s9
    $region7: #{tpu_custom_call.1} parent=1 // loop_footer_branch
      %8 = sbr.rel target = $region3
    $region8: #{tpu_custom_call.1} parent=1 // loop_exit
      _
    %123 = vsyncpa [#allocation3], 1
    %s124 = scalar_lea.sflag [#allocation3], 1
    %125 = vsyncpa %s124, 1
    %126 = vsyncpa [#allocation4], 1
    %s127 = scalar_lea.sflag [#allocation4], 1
    %128 = vsyncpa %s127, 1

// kernel: contrastive_bert_forward.3
$region0: #{contrastive_bert_forward.3}
  #allocation0 [shape = 'u32[]', space=smem, size = 0x4, offset = 0x4, fixed_abs, tag = 'smem constant byte address 0x4 - core index']
  #allocation1 [shape = 'u32[72,128]{1,0:T(1,128)}', space=vmem, size = 0x9000, scoped, tag = 'internal scratch']
  %s0 = inlined_call_operand.vmem [shape: f32[2,8,32], index: 0, kind: input, shape index: {}]
  %s1 = inlined_call_operand.vmem [shape: f32[8,32], index: 1, kind: input, shape index: {}]
  %s2 = inlined_call_operand.vmem [shape: f32[1,32], index: 2, kind: input, shape index: {}]
  %s3 = inlined_call_operand.vmem [shape: f32[1,32], index: 3, kind: input, shape index: {}]
  %s4 = inlined_call_operand.vmem [shape: f32[1,32], index: 4, kind: input, shape index: {}]
  %s5 = inlined_call_operand.vmem [shape: s32[2,1,8], index: 5, kind: input, shape index: {}]
  %s6 = inlined_call_operand.vmem [shape: f32[2,8,32], index: 6, kind: output, shape index: {0}]
  %s7 = inlined_call_operand.vmem [shape: f32[2,1,8], index: 7, kind: output, shape index: {1}]
  %8 = xla_tuple %s6, %s7
  %s9 = sld [smem:[#allocation0]]
  $region65: #{contrastive_bert_forward.3} parent=0
    _
  %s11 = ssub.s32 1, %s9
  %s12 = scalar_select 0, %s11, %s9
  loop: start=0, step=1, limit=4
  $region2: #{contrastive_bert_forward.3} parent=0 // loop_pre_header
    _
  $region3: #{contrastive_bert_forward.3} parent=0 // loop_header
    %s14 = sphi 0, %s18
    %p15 = scmp.ge.s32.totalorder %s14, 4
    %s24 = sphi 0, %s26
    %s27 = sphi 0, %s24
    %s28 = sphi 0, %s27
    %s44 = sphi 0, %s28
    %s48 = sphi 0, %s48
    %s50 = sphi 0, %s48
    %s51 = sphi 0, %s50
    %s65 = sphi 0, %s51
    %s69 = sphi 0, %s69
    %s71 = sphi 0, %s69
    %s72 = sphi 0, %s71
    %s86 = sphi 0, %s72
    %s90 = sphi 0, %s90
    %s92 = sphi 0, %s90
    %s93 = sphi 0, %s92
    %s107 = sphi 0, %s93
    %s111 = sphi 0, %s111
    %s113 = sphi 0, %s111
    %s114 = sphi 0, %s113
    %s128 = sphi 0, %s114
    %s134 = sphi 0, %s136
    %s137 = sphi 0, %s134
    %s138 = sphi 0, %s137
    %s154 = sphi 0, %s138
    %s160 = sphi 0, %s162
    %s163 = sphi 0, %s160
    %s164 = sphi 0, %s163
    %s180 = sphi 0, %s164
    %s186 = sphi 0, %s188
    %s189 = sphi 0, %s186
    %s190 = sphi 0, %s189
    %s206 = sphi 0, %s190
  $region4: #{contrastive_bert_forward.3} parent=0 // loop_header_branch
    %17 = sbr.rel (%p15) target = $region8
  $region5: #{contrastive_bert_forward.3} parent=0 // loop_body
    %s19 = ssub.s32 %s14, 1
    %s20 = ssub.s32 %s14, 2
    %s21 = sadd.s32 %s14, 1
    %s22 = ssub.s32 %s14, %s21
    %p23 = scmp.eq.s32.totalorder %s22, 0
    %s25 = sadd.s32 %s24, 1
    %s26 = scalar_select %p23, %s24, %s25
    %p29 = pneg %p23
    %p30 = scmp.eq.s32.totalorder %s14, 1
    %p31 = por %p29, %p30
    %p32 = scmp.ne.s32.totalorder %s24, %s27
    %p33 = scmp.eq.s32.totalorder %s14, 0
    %p34 = por %p32, %p33
    %p35 = scmp.ne.s32.totalorder %s24, %s27
    %p36 = scmp.eq.s32.totalorder %s19, 1
    %p37 = por %p35, %p36
    %p38 = scmp.ne.s32.totalorder %s27, %s28
    %p39 = scmp.eq.s32.totalorder %s19, 0
    %p40 = por %p38, %p39
    %p41 = scmp.ne.s32.totalorder %s27, %s28
    %p42 = scmp.eq.s32.totalorder %s20, 1
    %p43 = por %p41, %p42
    %p45 = scmp.ne.s32.totalorder %s28, %s44
    %p46 = scmp.eq.s32.totalorder %s20, 0
    %p47 = por %p45, %p46
    %s49 = sadd.s32 %s48, 1
    %p52 = scmp.eq.s32.totalorder %s14, 1
    %p53 = scmp.ne.s32.totalorder %s48, %s50
    %p54 = scmp.eq.s32.totalorder %s14, 0
    %p55 = por %p53, %p54
    %p56 = scmp.ne.s32.totalorder %s48, %s50
    %p57 = scmp.eq.s32.totalorder %s19, 1
    %p58 = por %p56, %p57
    %p59 = scmp.ne.s32.totalorder %s50, %s51
    %p60 = scmp.eq.s32.totalorder %s19, 0
    %p61 = por %p59, %p60
    %p62 = scmp.ne.s32.totalorder %s50, %s51
    %p63 = scmp.eq.s32.totalorder %s20, 1
    %p64 = por %p62, %p63
    %p66 = scmp.ne.s32.totalorder %s51, %s65
    %p67 = scmp.eq.s32.totalorder %s20, 0
    %p68 = por %p66, %p67
    %s70 = sadd.s32 %s69, 1
    %p73 = scmp.eq.s32.totalorder %s14, 1
    %p74 = scmp.ne.s32.totalorder %s69, %s71
    %p75 = scmp.eq.s32.totalorder %s14, 0
    %p76 = por %p74, %p75
    %p77 = scmp.ne.s32.totalorder %s69, %s71
    %p78 = scmp.eq.s32.totalorder %s19, 1
    %p79 = por %p77, %p78
    %p80 = scmp.ne.s32.totalorder %s71, %s72
    %p81 = scmp.eq.s32.totalorder %s19, 0
    %p82 = por %p80, %p81
    %p83 = scmp.ne.s32.totalorder %s71, %s72
    %p84 = scmp.eq.s32.totalorder %s20, 1
    %p85 = por %p83, %p84
    %p87 = scmp.ne.s32.totalorder %s72, %s86
    %p88 = scmp.eq.s32.totalorder %s20, 0
    %p89 = por %p87, %p88
    %s91 = sadd.s32 %s90, 1
    %p94 = scmp.eq.s32.totalorder %s14, 1
    %p95 = scmp.ne.s32.totalorder %s90, %s92
    %p96 = scmp.eq.s32.totalorder %s14, 0
    %p97 = por %p95, %p96
    %p98 = scmp.ne.s32.totalorder %s90, %s92
    %p99 = scmp.eq.s32.totalorder %s19, 1
    %p100 = por %p98, %p99
    %p101 = scmp.ne.s32.totalorder %s92, %s93
    %p102 = scmp.eq.s32.totalorder %s19, 0
    %p103 = por %p101, %p102
    %p104 = scmp.ne.s32.totalorder %s92, %s93
    %p105 = scmp.eq.s32.totalorder %s20, 1
    %p106 = por %p104, %p105
    %p108 = scmp.ne.s32.totalorder %s93, %s107
    %p109 = scmp.eq.s32.totalorder %s20, 0
    %p110 = por %p108, %p109
    %s112 = sadd.s32 %s111, 1
    %p115 = scmp.eq.s32.totalorder %s14, 1
    %p116 = scmp.ne.s32.totalorder %s111, %s113
    %p117 = scmp.eq.s32.totalorder %s14, 0
    %p118 = por %p116, %p117
    %p119 = scmp.ne.s32.totalorder %s111, %s113
    %p120 = scmp.eq.s32.totalorder %s19, 1
    %p121 = por %p119, %p120
    %p122 = scmp.ne.s32.totalorder %s113, %s114
    %p123 = scmp.eq.s32.totalorder %s19, 0
    %p124 = por %p122, %p123
    %p125 = scmp.ne.s32.totalorder %s113, %s114
    %p126 = scmp.eq.s32.totalorder %s20, 1
    %p127 = por %p125, %p126
    %p129 = scmp.ne.s32.totalorder %s114, %s128
    %p130 = scmp.eq.s32.totalorder %s20, 0
    %p131 = por %p129, %p130
    %s132 = ssub.s32 %s14, %s21
    %p133 = scmp.eq.s32.totalorder %s132, 0
    %s135 = sadd.s32 %s134, 1
    %s136 = scalar_select %p133, %s134, %s135
    %p139 = pneg %p133
    %p140 = scmp.eq.s32.totalorder %s14, 1
    %p141 = por %p139, %p140
    %p142 = scmp.ne.s32.totalorder %s134, %s137
    %p143 = scmp.eq.s32.totalorder %s14, 0
    %p144 = por %p142, %p143
    %p145 = scmp.ne.s32.totalorder %s134, %s137
    %p146 = scmp.eq.s32.totalorder %s19, 1
    %p147 = por %p145, %p146
    %p148 = scmp.ne.s32.totalorder %s137, %s138
    %p149 = scmp.eq.s32.totalorder %s19, 0
    %p150 = por %p148, %p149
    %p151 = scmp.ne.s32.totalorder %s137, %s138
    %p152 = scmp.eq.s32.totalorder %s20, 1
    %p153 = por %p151, %p152
    %p155 = scmp.ne.s32.totalorder %s138, %s154
    %p156 = scmp.eq.s32.totalorder %s20, 0
    %p157 = por %p155, %p156
    %s158 = ssub.s32 %s14, %s21
    %p159 = scmp.eq.s32.totalorder %s158, 0
    %s161 = sadd.s32 %s160, 1
    %s162 = scalar_select %p159, %s160, %s161
    %p165 = pneg %p159
    %p166 = scmp.eq.s32.totalorder %s14, 1
    %p167 = por %p165, %p166
    %p168 = scmp.ne.s32.totalorder %s160, %s163
    %p169 = scmp.eq.s32.totalorder %s14, 0
    %p170 = por %p168, %p169
    %p171 = scmp.ne.s32.totalorder %s160, %s163
    %p172 = scmp.eq.s32.totalorder %s19, 1
    %p173 = por %p171, %p172
    %p174 = scmp.ne.s32.totalorder %s163, %s164
    %p175 = scmp.eq.s32.totalorder %s19, 0
    %p176 = por %p174, %p175
    %p177 = scmp.ne.s32.totalorder %s163, %s164
    %p178 = scmp.eq.s32.totalorder %s20, 1
    %p179 = por %p177, %p178
    %p181 = scmp.ne.s32.totalorder %s164, %s180
    %p182 = scmp.eq.s32.totalorder %s20, 0
    %p183 = por %p181, %p182
    %s184 = ssub.s32 %s14, %s21
    %p185 = scmp.eq.s32.totalorder %s184, 0
    %s187 = sadd.s32 %s186, 1
    %s188 = scalar_select %p185, %s186, %s187
    %p191 = pneg %p185
    %p192 = scmp.eq.s32.totalorder %s14, 1
    %p193 = por %p191, %p192
    %p194 = scmp.ne.s32.totalorder %s186, %s189
    %p195 = scmp.eq.s32.totalorder %s14, 0
    %p196 = por %p194, %p195
    %p197 = scmp.ne.s32.totalorder %s186, %s189
    %p198 = scmp.eq.s32.totalorder %s19, 1
    %p199 = por %p197, %p198
    %p200 = scmp.ne.s32.totalorder %s189, %s190
    %p201 = scmp.eq.s32.totalorder %s19, 0
    %p202 = por %p200, %p201
    %p203 = scmp.ne.s32.totalorder %s189, %s190
    %p204 = scmp.eq.s32.totalorder %s20, 1
    %p205 = por %p203, %p204
    %p207 = scmp.ne.s32.totalorder %s190, %s206
    %p208 = scmp.eq.s32.totalorder %s20, 0
    %p209 = por %p207, %p208
    %p210 = scmp.le.s32.totalorder 1, %s14
    %p211 = scmp.lt.s32.totalorder %s14, 3
    %p212 = pnand %p210, %p211
    %p213 = pneg %p212
    // Predicated region
    $region9: #{contrastive_bert_forward.3} parent=5 // pred_check
      _
    $region10: #{contrastive_bert_forward.3} parent=5 // pred_check_branch
      %215 = sbr.rel (%p212) target = $region12
    $region11: #{contrastive_bert_forward.3} parent=5 // pred_region
      %s216 = ssub.s32 %s14, 1
      // Predicated region
      $region13: #{contrastive_bert_forward.3} parent=11 // pred_check
        %p217 = pneg %p61
      $region14: #{contrastive_bert_forward.3} parent=11 // pred_check_branch
        %219 = sbr.rel (%p217) target = $region16
      $region15: #{contrastive_bert_forward.3} parent=11 // pred_region
        _
      $region16: #{contrastive_bert_forward.3} parent=11 // pred_fallthru
        _
      // Predicated region
      $region17: #{contrastive_bert_forward.3} parent=11 // pred_check
        %p220 = pneg %p82
      $region18: #{contrastive_bert_forward.3} parent=11 // pred_check_branch
        %222 = sbr.rel (%p220) target = $region20
      $region19: #{contrastive_bert_forward.3} parent=11 // pred_region
        _
      $region20: #{contrastive_bert_forward.3} parent=11 // pred_fallthru
        _
      // Predicated region
      $region21: #{contrastive_bert_forward.3} parent=11 // pred_check
        %p223 = pneg %p103
      $region22: #{contrastive_bert_forward.3} parent=11 // pred_check_branch
        %225 = sbr.rel (%p223) target = $region24
      $region23: #{contrastive_bert_forward.3} parent=11 // pred_region
        _
      $region24: #{contrastive_bert_forward.3} parent=11 // pred_fallthru
        _
      // Predicated region
      $region25: #{contrastive_bert_forward.3} parent=11 // pred_check
        %p226 = pneg %p124
      $region26: #{contrastive_bert_forward.3} parent=11 // pred_check_branch
        %228 = sbr.rel (%p226) target = $region28
      $region27: #{contrastive_bert_forward.3} parent=11 // pred_region
        _
      $region28: #{contrastive_bert_forward.3} parent=11 // pred_fallthru
        _
    $region12: #{contrastive_bert_forward.3} parent=5 // pred_fallthru
      _
    %p229 = scmp.lt.s32.totalorder %s14, 2
    // Predicated region
    $region29: #{contrastive_bert_forward.3} parent=5 // pred_check
      %p230 = pneg %p229
    $region30: #{contrastive_bert_forward.3} parent=5 // pred_check_branch
      %232 = sbr.rel (%p230) target = $region32
    $region31: #{contrastive_bert_forward.3} parent=5 // pred_region
      // Predicated region
      $region33: #{contrastive_bert_forward.3} parent=31 // pred_check
        %p233 = pneg %p34
      $region34: #{contrastive_bert_forward.3} parent=31 // pred_check_branch
        %235 = sbr.rel (%p233) target = $region36
      $region35: #{contrastive_bert_forward.3} parent=31 // pred_region
        %p236 = scmp.lt.s32.totalorder %s14, 1
        %s237 = scalar_select %p236, %s14, 1
        %s238 = smul.addr %s237, 8
        %s239 = scalar_lea.vmem %s0, %s238
      $region36: #{contrastive_bert_forward.3} parent=31 // pred_fallthru
        _
      // Predicated region
      $region37: #{contrastive_bert_forward.3} parent=31 // pred_check
        %p240 = pneg %p144
      $region38: #{contrastive_bert_forward.3} parent=31 // pred_check_branch
        %242 = sbr.rel (%p240) target = $region40
      $region39: #{contrastive_bert_forward.3} parent=31 // pred_region
        %p243 = scmp.lt.s32.totalorder %s14, 1
        %s244 = scalar_select %p243, %s14, 1
        %s245 = scalar_lea.vmem %s5, %s244
      $region40: #{contrastive_bert_forward.3} parent=31 // pred_fallthru
        _
    $region32: #{contrastive_bert_forward.3} parent=5 // pred_fallthru
      _
    %p246 = scmp.le.s32.totalorder 1, %s14
    %p247 = scmp.lt.s32.totalorder %s14, 3
    %p248 = pnand %p246, %p247
    %p249 = pneg %p248
    // Predicated region
    $region41: #{contrastive_bert_forward.3} parent=5 // pred_check
      _
    $region42: #{contrastive_bert_forward.3} parent=5 // pred_check_branch
      %251 = sbr.rel (%p248) target = $region44
    $region43: #{contrastive_bert_forward.3} parent=5 // pred_region
      %s252 = ssub.s32 %s14, 1
      %p253 = scmp.lt.s32.totalorder %s19, 1
      %s254 = scalar_select %p253, %s19, 1
      %s255 = smul.addr %s254, 8
      %s256 = scalar_lea.vmem %s0, %s255
      %p257 = pneg %p40
      %p258 = pneg %p37
      %p259 = pneg %p61
      %p260 = pneg %p58
      %p261 = pneg %p82
      %p262 = pneg %p79
      %p263 = pneg %p103
      %p264 = pneg %p100
      %p265 = pneg %p124
      %p266 = pneg %p121
      %p267 = scmp.lt.s32.totalorder %s19, 1
      %s268 = scalar_select %p267, %s19, 1
      %s269 = scalar_lea.vmem %s5, %s268
      %p270 = pneg %p150
      %p271 = pneg %p147
      %p272 = pneg %p176
      %p273 = pneg %p173
      %p274 = scmp.lt.s32.totalorder %s19, 1
      %s275 = scalar_select %p274, %s19, 1
      %s276 = smul.addr %s275, 8
      %s277 = scalar_lea.vmem %s6, %s276
      %p278 = pneg %p202
      %p279 = pneg %p199
      %p280 = scmp.lt.s32.totalorder %s19, 1
      %s281 = scalar_select %p280, %s19, 1
      %s282 = scalar_lea.vmem %s7, %s281
      %p283 = scmp.lt.s32.totalorder %s19, 1
      %s284 = scalar_select %p283, %s19, 1
      %s285 = smul.addr %s284, 8
      %s286 = scalar_lea.vmem %s0, %s285
      %p287 = scmp.lt.s32.totalorder %s19, 1
      %s288 = scalar_select %p287, %s19, 1
      %s289 = scalar_lea.vmem %s5, %s288
      %p290 = scmp.lt.s32.totalorder %s19, 1
      %s291 = scalar_select %p290, %s19, 1
      %s292 = smul.addr %s291, 8
      %s293 = scalar_lea.vmem %s6, %s292
      %p294 = scmp.lt.s32.totalorder %s19, 1
      %s295 = scalar_select %p294, %s19, 1
      %s296 = scalar_lea.vmem %s7, %s295
      %v297 = vld [vmem:[%s286] sm:$0xff]
      %v298 = vld [vmem:[%s1] sm:$0xff]
      %v299 = vadd.f32 %v297, %v298
      %v300 = vld [vmem:[%s2] sm:$0x1]
      %v302 = vperm.slane %v300, 0
      %v304 = vadd.f32 %v299, %v302
      %v305 = vld [vmem:[%s3] sm:$0x1]
      %v306 = vld [vmem:[%s4] sm:$0x1]
      %vm307 = vcmask 261120
      %v308 = vsel %vm307, %v304, 0.0
      %309 = vadd.xlane.f32.xlu0 %v308
      %v310 = vpop.xlane.xlu0 %309
      %v311 = vrcp.pop 32.0
      %v312 = vmul.f32 32.0, %v311
      %v313 = vsub.f32 1.0, %v312
      %v314 = vmul.f32 %v311, %v313
      %v315 = vadd.f32 %v311, %v314
      %vm316 = vweird.f32 %v311
      %v317 = vsel %vm316, %v311, %v315
      %v318 = vmul.f32 %v310, %v317
      %v319 = vsub.f32 %v304, %v318
      %v320 = vmul.f32 %v319, %v319
      %v321 = vsel %vm307, %v320, 0.0
      %322 = vadd.xlane.f32.xlu0 %v321
      %v323 = vpop.xlane.xlu0 %322
      %v324 = vmul.f32 %v323, %v317
      %v325 = vadd.f32 %v324, 1e-12
      %v326 = vrsqrt.pop %v325
      %v327 = vmul.f32 %v326, %v325
      %v328 = vmul.f32 %v327, %v326
      %v329 = vmul.f32 0.5, %v328
      %v330 = vsub.f32 1.5, %v329
      %v331 = vmul.f32 %v326, %v330
      %vm332 = vweird.f32 %v325
      %vm333 = vweird.f32 %v326
      %vm334 = vmor %vm332, %vm333
      %v335 = vsel %vm334, %v326, %v331
      %v336 = vmul.f32 %v319, %v335
      %v338 = vperm.slane %v305, 0
      %v340 = vmul.f32 %v336, %v338
      %v342 = vperm.slane %v306, 0
      %v344 = vadd.f32 %v340, %v342
      %345 = vst.msk [vmem:[%s293] sm:$0xff] %vm307, %v344
      %v346 = vld [vmem:[%s289] sm:$0x1]
      %v347 = vcvt.s32.f32 %v346
      %v348 = vsub.f32 1.0, %v347
      %v349 = vmul.f32 %v348, -10000.0
      %vm350 = vcmask 57344
      %351 = vst.msk [vmem:[%s296] sm:$0x1] %vm350, %v349
      %p352 = scmp.lt.s32.totalorder %s19, 1
      %s353 = scalar_select %p352, %s19, 1
      %s354 = smul.addr %s353, 8
      %s355 = scalar_lea.vmem %s6, %s354
      %p356 = scmp.lt.s32.totalorder %s19, 1
      %s357 = scalar_select %p356, %s19, 1
      %s358 = scalar_lea.vmem %s7, %s357
      // Predicated region
      $region45: #{contrastive_bert_forward.3} parent=43 // pred_check
        %p359 = pneg %p173
      $region46: #{contrastive_bert_forward.3} parent=43 // pred_check_branch
        %361 = sbr.rel (%p359) target = $region48
      $region47: #{contrastive_bert_forward.3} parent=43 // pred_region
        _
      $region48: #{contrastive_bert_forward.3} parent=43 // pred_fallthru
        _
      // Predicated region
      $region49: #{contrastive_bert_forward.3} parent=43 // pred_check
        %p362 = pneg %p199
      $region50: #{contrastive_bert_forward.3} parent=43 // pred_check_branch
        %364 = sbr.rel (%p362) target = $region52
      $region51: #{contrastive_bert_forward.3} parent=43 // pred_region
        _
      $region52: #{contrastive_bert_forward.3} parent=43 // pred_fallthru
        _
    $region44: #{contrastive_bert_forward.3} parent=5 // pred_fallthru
      _
    %p365 = scmp.le.s32.totalorder 2, %s14
    // Predicated region
    $region53: #{contrastive_bert_forward.3} parent=5 // pred_check
      %p366 = pneg %p365
    $region54: #{contrastive_bert_forward.3} parent=5 // pred_check_branch
      %368 = sbr.rel (%p366) target = $region56
    $region55: #{contrastive_bert_forward.3} parent=5 // pred_region
      %s369 = ssub.s32 %s14, 2
      // Predicated region
      $region57: #{contrastive_bert_forward.3} parent=55 // pred_check
        %p370 = pneg %p179
      $region58: #{contrastive_bert_forward.3} parent=55 // pred_check_branch
        %372 = sbr.rel (%p370) target = $region60
      $region59: #{contrastive_bert_forward.3} parent=55 // pred_region
        %p373 = scmp.lt.s32.totalorder %s20, 1
        %s374 = scalar_select %p373, %s20, 1
        %s375 = smul.addr %s374, 8
        %s376 = scalar_lea.vmem %s6, %s375
      $region60: #{contrastive_bert_forward.3} parent=55 // pred_fallthru
        _
      // Predicated region
      $region61: #{contrastive_bert_forward.3} parent=55 // pred_check
        %p377 = pneg %p205
      $region62: #{contrastive_bert_forward.3} parent=55 // pred_check_branch
        %379 = sbr.rel (%p377) target = $region64
      $region63: #{contrastive_bert_forward.3} parent=55 // pred_region
        %p380 = scmp.lt.s32.totalorder %s20, 1
        %s381 = scalar_select %p380, %s20, 1
        %s382 = scalar_lea.vmem %s7, %s381
      $region64: #{contrastive_bert_forward.3} parent=55 // pred_fallthru
        _
    $region56: #{contrastive_bert_forward.3} parent=5 // pred_fallthru
      _
  $region6: #{contrastive_bert_forward.3} parent=0 // loop_footer
    %s18 = sadd.s32 1, %s14
  $region7: #{contrastive_bert_forward.3} parent=0 // loop_footer_branch
    %13 = sbr.rel target = $region3
  $region8: #{contrastive_bert_forward.3} parent=0 // loop_exit
    _

// kernel: contrastive_bert_forward.4
$region0: #{contrastive_bert_forward.4}
  #allocation0 [shape = 'u32[]', space=smem, size = 0x4, offset = 0x4, fixed_abs, tag = 'smem constant byte address 0x4 - core index']
  #allocation1 [shape = 'u32[72,128]{1,0:T(1,128)}', space=vmem, size = 0x9000, scoped, tag = 'internal scratch']
  #allocation2 [shape = 'bf16[2,8,16]{2,1,0:T(8,128)(2,1)}', space=vmem, size = 0x1000, scoped, tag = 'scratch operand']
  #allocation3 [shape = 'bf16[2,8,16]{2,1,0:T(8,128)(2,1)}', space=vmem, size = 0x1000, scoped, tag = 'scratch operand']
  %s0 = inlined_call_operand.vmem [shape: f32[2,8,32], index: 0, kind: input, shape index: {}, may-alias: {0,1}]
  %s1 = inlined_call_operand.vmem [shape: f32[2,8,32], index: 1, kind: input, shape index: {}, may-alias: {0,1}]
  %s2 = inlined_call_operand.vmem [shape: f32[2,1,8], index: 2, kind: input, shape index: {}]
  %s3 = inlined_call_operand.vmem [shape: bf16[2,32,16], index: 3, kind: input, shape index: {}]
  %s4 = inlined_call_operand.vmem [shape: f32[2,1,16], index: 4, kind: input, shape index: {}]
  %s5 = inlined_call_operand.vmem [shape: bf16[2,32,16], index: 5, kind: input, shape index: {}]
  %s6 = inlined_call_operand.vmem [shape: f32[2,1,16], index: 6, kind: input, shape index: {}]
  %s7 = inlined_call_operand.vmem [shape: bf16[2,32,16], index: 7, kind: input, shape index: {}]
  %s8 = inlined_call_operand.vmem [shape: f32[2,1,16], index: 8, kind: input, shape index: {}]
  %s9 = inlined_call_operand.vmem [shape: bf16[2,16,32], index: 9, kind: input, shape index: {}]
  %s10 = inlined_call_operand.vmem [shape: f32[1,32], index: 10, kind: input, shape index: {}]
  %s11 = inlined_call_operand.vmem [shape: f32[1,32], index: 11, kind: input, shape index: {}]
  %s12 = inlined_call_operand.vmem [shape: f32[1,32], index: 12, kind: input, shape index: {}]
  %s13 = inlined_call_operand.vmem [shape: bf16[32,64], index: 13, kind: input, shape index: {}]
  %s14 = inlined_call_operand.vmem [shape: f32[1,64], index: 14, kind: input, shape index: {}]
  %s15 = inlined_call_operand.vmem [shape: bf16[64,32], index: 15, kind: input, shape index: {}]
  %s16 = inlined_call_operand.vmem [shape: f32[1,32], index: 16, kind: input, shape index: {}]
  %s17 = inlined_call_operand.vmem [shape: f32[1,32], index: 17, kind: input, shape index: {}]
  %s18 = inlined_call_operand.vmem [shape: f32[1,32], index: 18, kind: input, shape index: {}]
  %s19 = inlined_call_operand.vmem [shape: f32[2,8,32], index: 19, kind: output, shape index: {}]
  %s20 = sld [smem:[#allocation0]]
  $region113: #{contrastive_bert_forward.4} parent=0
    _
  %s22 = ssub.s32 1, %s20
  %s23 = scalar_select 0, %s22, %s20
  loop: start=0, step=1, limit=4
  $region2: #{contrastive_bert_forward.4} parent=0 // loop_pre_header
    _
  $region3: #{contrastive_bert_forward.4} parent=0 // loop_header
    %s25 = sphi 0, %s29
    %p26 = scmp.ge.s32.totalorder %s25, 4
    %s32 = sphi 0, %s44
    %s33 = sphi 0, %s40
    %s34 = sphi 0, %s32
    %s35 = sphi 0, %s33
    %s36 = sphi 0, %s34
    %s37 = sphi 0, %s35
    %s49 = sphi 0, %s51
    %s52 = sphi 0, %s49
    %s53 = sphi 0, %s52
    %s69 = sphi 0, %s53
    %s75 = sphi 0, %s77
    %s78 = sphi 0, %s75
    %s79 = sphi 0, %s78
    %s95 = sphi 0, %s79
    %s101 = sphi 0, %s103
    %s104 = sphi 0, %s101
    %s105 = sphi 0, %s104
    %s121 = sphi 0, %s105
    %s125 = sphi 0, %s125
    %s127 = sphi 0, %s125
    %s128 = sphi 0, %s127
    %s142 = sphi 0, %s128
    %s146 = sphi 0, %s146
    %s148 = sphi 0, %s146
    %s149 = sphi 0, %s148
    %s163 = sphi 0, %s149
    %s167 = sphi 0, %s167
    %s169 = sphi 0, %s167
    %s170 = sphi 0, %s169
    %s184 = sphi 0, %s170
    %s188 = sphi 0, %s188
    %s190 = sphi 0, %s188
    %s191 = sphi 0, %s190
    %s205 = sphi 0, %s191
    %s209 = sphi 0, %s209
    %s211 = sphi 0, %s209
    %s212 = sphi 0, %s211
    %s226 = sphi 0, %s212
    %s230 = sphi 0, %s230
    %s232 = sphi 0, %s230
    %s233 = sphi 0, %s232
    %s247 = sphi 0, %s233
    %s251 = sphi 0, %s251
    %s253 = sphi 0, %s251
    %s254 = sphi 0, %s253
    %s268 = sphi 0, %s254
    %s272 = sphi 0, %s272
    %s274 = sphi 0, %s272
    %s275 = sphi 0, %s274
    %s289 = sphi 0, %s275
    %s293 = sphi 0, %s293
    %s295 = sphi 0, %s293
    %s296 = sphi 0, %s295
    %s310 = sphi 0, %s296
    %s314 = sphi 0, %s314
    %s316 = sphi 0, %s314
    %s317 = sphi 0, %s316
    %s331 = sphi 0, %s317
    %s335 = sphi 0, %s335
    %s337 = sphi 0, %s335
    %s338 = sphi 0, %s337
    %s352 = sphi 0, %s338
    %s356 = sphi 0, %s356
    %s358 = sphi 0, %s356
    %s359 = sphi 0, %s358
    %s373 = sphi 0, %s359
    %s377 = sphi 0, %s377
    %s379 = sphi 0, %s377
    %s380 = sphi 0, %s379
    %s394 = sphi 0, %s380
    %s398 = sphi 0, %s398
    %s400 = sphi 0, %s398
    %s401 = sphi 0, %s400
    %s415 = sphi 0, %s401
    %s419 = sphi 0, %s419
    %s421 = sphi 0, %s419
    %s422 = sphi 0, %s421
    %s436 = sphi 0, %s422
    %s440 = sphi 0, %s440
    %s442 = sphi 0, %s440
    %s443 = sphi 0, %s442
    %s457 = sphi 0, %s443
    %s465 = sphi 0, %s467
    %s468 = sphi 0, %s465
    %s469 = sphi 0, %s468
    %s485 = sphi 0, %s469
  $region4: #{contrastive_bert_forward.4} parent=0 // loop_header_branch
    %28 = sbr.rel (%p26) target = $region8
  $region5: #{contrastive_bert_forward.4} parent=0 // loop_body
    %s30 = ssub.s32 %s25, 1
    %s31 = ssub.s32 %s25, 2
    %s38 = sadd.s32 1, %s33
    %p39 = scmp.ge.s32.totalorder %s38, 1
    %s40 = scalar_select %p39, 0, %s38
    %s41 = sadd.s32 1, %s32
    %s42 = scalar_select %p39, %s41, %s32
    %p43 = scmp.ge.s32.totalorder %s42, 2
    %s44 = scalar_select %p43, 0, %s42
    %s45 = ssub.s32 %s32, %s44
    %s46 = ssub.s32 %s33, %s40
    %s47 = sor.u32 %s45, %s46
    %p48 = scmp.eq.s32.totalorder %s47, 0
    %s50 = sadd.s32 %s49, 1
    %s51 = scalar_select %p48, %s49, %s50
    %p54 = pneg %p48
    %p55 = scmp.eq.s32.totalorder %s25, 1
    %p56 = por %p54, %p55
    %p57 = scmp.ne.s32.totalorder %s49, %s52
    %p58 = scmp.eq.s32.totalorder %s25, 0
    %p59 = por %p57, %p58
    %p60 = scmp.ne.s32.totalorder %s49, %s52
    %p61 = scmp.eq.s32.totalorder %s30, 1
    %p62 = por %p60, %p61
    %p63 = scmp.ne.s32.totalorder %s52, %s53
    %p64 = scmp.eq.s32.totalorder %s30, 0
    %p65 = por %p63, %p64
    %p66 = scmp.ne.s32.totalorder %s52, %s53
    %p67 = scmp.eq.s32.totalorder %s31, 1
    %p68 = por %p66, %p67
    %p70 = scmp.ne.s32.totalorder %s53, %s69
    %p71 = scmp.eq.s32.totalorder %s31, 0
    %p72 = por %p70, %p71
    %s73 = ssub.s32 %s32, %s44
    %p74 = scmp.eq.s32.totalorder %s73, 0
    %s76 = sadd.s32 %s75, 1
    %s77 = scalar_select %p74, %s75, %s76
    %p80 = pneg %p74
    %p81 = scmp.eq.s32.totalorder %s25, 1
    %p82 = por %p80, %p81
    %p83 = scmp.ne.s32.totalorder %s75, %s78
    %p84 = scmp.eq.s32.totalorder %s25, 0
    %p85 = por %p83, %p84
    %p86 = scmp.ne.s32.totalorder %s75, %s78
    %p87 = scmp.eq.s32.totalorder %s30, 1
    %p88 = por %p86, %p87
    %p89 = scmp.ne.s32.totalorder %s78, %s79
    %p90 = scmp.eq.s32.totalorder %s30, 0
    %p91 = por %p89, %p90
    %p92 = scmp.ne.s32.totalorder %s78, %s79
    %p93 = scmp.eq.s32.totalorder %s31, 1
    %p94 = por %p92, %p93
    %p96 = scmp.ne.s32.totalorder %s79, %s95
    %p97 = scmp.eq.s32.totalorder %s31, 0
    %p98 = por %p96, %p97
    %s99 = ssub.s32 %s32, %s44
    %p100 = scmp.eq.s32.totalorder %s99, 0
    %s102 = sadd.s32 %s101, 1
    %s103 = scalar_select %p100, %s101, %s102
    %p106 = pneg %p100
    %p107 = scmp.eq.s32.totalorder %s25, 1
    %p108 = por %p106, %p107
    %p109 = scmp.ne.s32.totalorder %s101, %s104
    %p110 = scmp.eq.s32.totalorder %s25, 0
    %p111 = por %p109, %p110
    %p112 = scmp.ne.s32.totalorder %s101, %s104
    %p113 = scmp.eq.s32.totalorder %s30, 1
    %p114 = por %p112, %p113
    %p115 = scmp.ne.s32.totalorder %s104, %s105
    %p116 = scmp.eq.s32.totalorder %s30, 0
    %p117 = por %p115, %p116
    %p118 = scmp.ne.s32.totalorder %s104, %s105
    %p119 = scmp.eq.s32.totalorder %s31, 1
    %p120 = por %p118, %p119
    %p122 = scmp.ne.s32.totalorder %s105, %s121
    %p123 = scmp.eq.s32.totalorder %s31, 0
    %p124 = por %p122, %p123
    %s126 = sadd.s32 %s125, 1
    %p129 = scmp.eq.s32.totalorder %s25, 1
    %p130 = scmp.ne.s32.totalorder %s125, %s127
    %p131 = scmp.eq.s32.totalorder %s25, 0
    %p132 = por %p130, %p131
    %p133 = scmp.ne.s32.totalorder %s125, %s127
    %p134 = scmp.eq.s32.totalorder %s30, 1
    %p135 = por %p133, %p134
    %p136 = scmp.ne.s32.totalorder %s127, %s128
    %p137 = scmp.eq.s32.totalorder %s30, 0
    %p138 = por %p136, %p137
    %p139 = scmp.ne.s32.totalorder %s127, %s128
    %p140 = scmp.eq.s32.totalorder %s31, 1
    %p141 = por %p139, %p140
    %p143 = scmp.ne.s32.totalorder %s128, %s142
    %p144 = scmp.eq.s32.totalorder %s31, 0
    %p145 = por %p143, %p144
    %s147 = sadd.s32 %s146, 1
    %p150 = scmp.eq.s32.totalorder %s25, 1
    %p151 = scmp.ne.s32.totalorder %s146, %s148
    %p152 = scmp.eq.s32.totalorder %s25, 0
    %p153 = por %p151, %p152
    %p154 = scmp.ne.s32.totalorder %s146, %s148
    %p155 = scmp.eq.s32.totalorder %s30, 1
    %p156 = por %p154, %p155
    %p157 = scmp.ne.s32.totalorder %s148, %s149
    %p158 = scmp.eq.s32.totalorder %s30, 0
    %p159 = por %p157, %p158
    %p160 = scmp.ne.s32.totalorder %s148, %s149
    %p161 = scmp.eq.s32.totalorder %s31, 1
    %p162 = por %p160, %p161
    %p164 = scmp.ne.s32.totalorder %s149, %s163
    %p165 = scmp.eq.s32.totalorder %s31, 0
    %p166 = por %p164, %p165
    %s168 = sadd.s32 %s167, 1
    %p171 = scmp.eq.s32.totalorder %s25, 1
    %p172 = scmp.ne.s32.totalorder %s167, %s169
    %p173 = scmp.eq.s32.totalorder %s25, 0
    %p174 = por %p172, %p173
    %p175 = scmp.ne.s32.totalorder %s167, %s169
    %p176 = scmp.eq.s32.totalorder %s30, 1
    %p177 = por %p175, %p176
    %p178 = scmp.ne.s32.totalorder %s169, %s170
    %p179 = scmp.eq.s32.totalorder %s30, 0
    %p180 = por %p178, %p179
    %p181 = scmp.ne.s32.totalorder %s169, %s170
    %p182 = scmp.eq.s32.totalorder %s31, 1
    %p183 = por %p181, %p182
    %p185 = scmp.ne.s32.totalorder %s170, %s184
    %p186 = scmp.eq.s32.totalorder %s31, 0
    %p187 = por %p185, %p186
    %s189 = sadd.s32 %s188, 1
    %p192 = scmp.eq.s32.totalorder %s25, 1
    %p193 = scmp.ne.s32.totalorder %s188, %s190
    %p194 = scmp.eq.s32.totalorder %s25, 0
    %p195 = por %p193, %p194
    %p196 = scmp.ne.s32.totalorder %s188, %s190
    %p197 = scmp.eq.s32.totalorder %s30, 1
    %p198 = por %p196, %p197
    %p199 = scmp.ne.s32.totalorder %s190, %s191
    %p200 = scmp.eq.s32.totalorder %s30, 0
    %p201 = por %p199, %p200
    %p202 = scmp.ne.s32.totalorder %s190, %s191
    %p203 = scmp.eq.s32.totalorder %s31, 1
    %p204 = por %p202, %p203
    %p206 = scmp.ne.s32.totalorder %s191, %s205
    %p207 = scmp.eq.s32.totalorder %s31, 0
    %p208 = por %p206, %p207
    %s210 = sadd.s32 %s209, 1
    %p213 = scmp.eq.s32.totalorder %s25, 1
    %p214 = scmp.ne.s32.totalorder %s209, %s211
    %p215 = scmp.eq.s32.totalorder %s25, 0
    %p216 = por %p214, %p215
    %p217 = scmp.ne.s32.totalorder %s209, %s211
    %p218 = scmp.eq.s32.totalorder %s30, 1
    %p219 = por %p217, %p218
    %p220 = scmp.ne.s32.totalorder %s211, %s212
    %p221 = scmp.eq.s32.totalorder %s30, 0
    %p222 = por %p220, %p221
    %p223 = scmp.ne.s32.totalorder %s211, %s212
    %p224 = scmp.eq.s32.totalorder %s31, 1
    %p225 = por %p223, %p224
    %p227 = scmp.ne.s32.totalorder %s212, %s226
    %p228 = scmp.eq.s32.totalorder %s31, 0
    %p229 = por %p227, %p228
    %s231 = sadd.s32 %s230, 1
    %p234 = scmp.eq.s32.totalorder %s25, 1
    %p235 = scmp.ne.s32.totalorder %s230, %s232
    %p236 = scmp.eq.s32.totalorder %s25, 0
    %p237 = por %p235, %p236
    %p238 = scmp.ne.s32.totalorder %s230, %s232
    %p239 = scmp.eq.s32.totalorder %s30, 1
    %p240 = por %p238, %p239
    %p241 = scmp.ne.s32.totalorder %s232, %s233
    %p242 = scmp.eq.s32.totalorder %s30, 0
    %p243 = por %p241, %p242
    %p244 = scmp.ne.s32.totalorder %s232, %s233
    %p245 = scmp.eq.s32.totalorder %s31, 1
    %p246 = por %p244, %p245
    %p248 = scmp.ne.s32.totalorder %s233, %s247
    %p249 = scmp.eq.s32.totalorder %s31, 0
    %p250 = por %p248, %p249
    %s252 = sadd.s32 %s251, 1
    %p255 = scmp.eq.s32.totalorder %s25, 1
    %p256 = scmp.ne.s32.totalorder %s251, %s253
    %p257 = scmp.eq.s32.totalorder %s25, 0
    %p258 = por %p256, %p257
    %p259 = scmp.ne.s32.totalorder %s251, %s253
    %p260 = scmp.eq.s32.totalorder %s30, 1
    %p261 = por %p259, %p260
    %p262 = scmp.ne.s32.totalorder %s253, %s254
    %p263 = scmp.eq.s32.totalorder %s30, 0
    %p264 = por %p262, %p263
    %p265 = scmp.ne.s32.totalorder %s253, %s254
    %p266 = scmp.eq.s32.totalorder %s31, 1
    %p267 = por %p265, %p266
    %p269 = scmp.ne.s32.totalorder %s254, %s268
    %p270 = scmp.eq.s32.totalorder %s31, 0
    %p271 = por %p269, %p270
    %s273 = sadd.s32 %s272, 1
    %p276 = scmp.eq.s32.totalorder %s25, 1
    %p277 = scmp.ne.s32.totalorder %s272, %s274
    %p278 = scmp.eq.s32.totalorder %s25, 0
    %p279 = por %p277, %p278
    %p280 = scmp.ne.s32.totalorder %s272, %s274
    %p281 = scmp.eq.s32.totalorder %s30, 1
    %p282 = por %p280, %p281
    %p283 = scmp.ne.s32.totalorder %s274, %s275
    %p284 = scmp.eq.s32.totalorder %s30, 0
    %p285 = por %p283, %p284
    %p286 = scmp.ne.s32.totalorder %s274, %s275
    %p287 = scmp.eq.s32.totalorder %s31, 1
    %p288 = por %p286, %p287
    %p290 = scmp.ne.s32.totalorder %s275, %s289
    %p291 = scmp.eq.s32.totalorder %s31, 0
    %p292 = por %p290, %p291
    %s294 = sadd.s32 %s293, 1
    %p297 = scmp.eq.s32.totalorder %s25, 1
    %p298 = scmp.ne.s32.totalorder %s293, %s295
    %p299 = scmp.eq.s32.totalorder %s25, 0
    %p300 = por %p298, %p299
    %p301 = scmp.ne.s32.totalorder %s293, %s295
    %p302 = scmp.eq.s32.totalorder %s30, 1
    %p303 = por %p301, %p302
    %p304 = scmp.ne.s32.totalorder %s295, %s296
    %p305 = scmp.eq.s32.totalorder %s30, 0
    %p306 = por %p304, %p305
    %p307 = scmp.ne.s32.totalorder %s295, %s296
    %p308 = scmp.eq.s32.totalorder %s31, 1
    %p309 = por %p307, %p308
    %p311 = scmp.ne.s32.totalorder %s296, %s310
    %p312 = scmp.eq.s32.totalorder %s31, 0
    %p313 = por %p311, %p312
    %s315 = sadd.s32 %s314, 1
    %p318 = scmp.eq.s32.totalorder %s25, 1
    %p319 = scmp.ne.s32.totalorder %s314, %s316
    %p320 = scmp.eq.s32.totalorder %s25, 0
    %p321 = por %p319, %p320
    %p322 = scmp.ne.s32.totalorder %s314, %s316
    %p323 = scmp.eq.s32.totalorder %s30, 1
    %p324 = por %p322, %p323
    %p325 = scmp.ne.s32.totalorder %s316, %s317
    %p326 = scmp.eq.s32.totalorder %s30, 0
    %p327 = por %p325, %p326
    %p328 = scmp.ne.s32.totalorder %s316, %s317
    %p329 = scmp.eq.s32.totalorder %s31, 1
    %p330 = por %p328, %p329
    %p332 = scmp.ne.s32.totalorder %s317, %s331
    %p333 = scmp.eq.s32.totalorder %s31, 0
    %p334 = por %p332, %p333
    %s336 = sadd.s32 %s335, 1
    %p339 = scmp.eq.s32.totalorder %s25, 1
    %p340 = scmp.ne.s32.totalorder %s335, %s337
    %p341 = scmp.eq.s32.totalorder %s25, 0
    %p342 = por %p340, %p341
    %p343 = scmp.ne.s32.totalorder %s335, %s337
    %p344 = scmp.eq.s32.totalorder %s30, 1
    %p345 = por %p343, %p344
    %p346 = scmp.ne.s32.totalorder %s337, %s338
    %p347 = scmp.eq.s32.totalorder %s30, 0
    %p348 = por %p346, %p347
    %p349 = scmp.ne.s32.totalorder %s337, %s338
    %p350 = scmp.eq.s32.totalorder %s31, 1
    %p351 = por %p349, %p350
    %p353 = scmp.ne.s32.totalorder %s338, %s352
    %p354 = scmp.eq.s32.totalorder %s31, 0
    %p355 = por %p353, %p354
    %s357 = sadd.s32 %s356, 1
    %p360 = scmp.eq.s32.totalorder %s25, 1
    %p361 = scmp.ne.s32.totalorder %s356, %s358
    %p362 = scmp.eq.s32.totalorder %s25, 0
    %p363 = por %p361, %p362
    %p364 = scmp.ne.s32.totalorder %s356, %s358
    %p365 = scmp.eq.s32.totalorder %s30, 1
    %p366 = por %p364, %p365
    %p367 = scmp.ne.s32.totalorder %s358, %s359
    %p368 = scmp.eq.s32.totalorder %s30, 0
    %p369 = por %p367, %p368
    %p370 = scmp.ne.s32.totalorder %s358, %s359
    %p371 = scmp.eq.s32.totalorder %s31, 1
    %p372 = por %p370, %p371
    %p374 = scmp.ne.s32.totalorder %s359, %s373
    %p375 = scmp.eq.s32.totalorder %s31, 0
    %p376 = por %p374, %p375
    %s378 = sadd.s32 %s377, 1
    %p381 = scmp.eq.s32.totalorder %s25, 1
    %p382 = scmp.ne.s32.totalorder %s377, %s379
    %p383 = scmp.eq.s32.totalorder %s25, 0
    %p384 = por %p382, %p383
    %p385 = scmp.ne.s32.totalorder %s377, %s379
    %p386 = scmp.eq.s32.totalorder %s30, 1
    %p387 = por %p385, %p386
    %p388 = scmp.ne.s32.totalorder %s379, %s380
    %p389 = scmp.eq.s32.totalorder %s30, 0
    %p390 = por %p388, %p389
    %p391 = scmp.ne.s32.totalorder %s379, %s380
    %p392 = scmp.eq.s32.totalorder %s31, 1
    %p393 = por %p391, %p392
    %p395 = scmp.ne.s32.totalorder %s380, %s394
    %p396 = scmp.eq.s32.totalorder %s31, 0
    %p397 = por %p395, %p396
    %s399 = sadd.s32 %s398, 1
    %p402 = scmp.eq.s32.totalorder %s25, 1
    %p403 = scmp.ne.s32.totalorder %s398, %s400
    %p404 = scmp.eq.s32.totalorder %s25, 0
    %p405 = por %p403, %p404
    %p406 = scmp.ne.s32.totalorder %s398, %s400
    %p407 = scmp.eq.s32.totalorder %s30, 1
    %p408 = por %p406, %p407
    %p409 = scmp.ne.s32.totalorder %s400, %s401
    %p410 = scmp.eq.s32.totalorder %s30, 0
    %p411 = por %p409, %p410
    %p412 = scmp.ne.s32.totalorder %s400, %s401
    %p413 = scmp.eq.s32.totalorder %s31, 1
    %p414 = por %p412, %p413
    %p416 = scmp.ne.s32.totalorder %s401, %s415
    %p417 = scmp.eq.s32.totalorder %s31, 0
    %p418 = por %p416, %p417
    %s420 = sadd.s32 %s419, 1
    %p423 = scmp.eq.s32.totalorder %s25, 1
    %p424 = scmp.ne.s32.totalorder %s419, %s421
    %p425 = scmp.eq.s32.totalorder %s25, 0
    %p426 = por %p424, %p425
    %p427 = scmp.ne.s32.totalorder %s419, %s421
    %p428 = scmp.eq.s32.totalorder %s30, 1
    %p429 = por %p427, %p428
    %p430 = scmp.ne.s32.totalorder %s421, %s422
    %p431 = scmp.eq.s32.totalorder %s30, 0
    %p432 = por %p430, %p431
    %p433 = scmp.ne.s32.totalorder %s421, %s422
    %p434 = scmp.eq.s32.totalorder %s31, 1
    %p435 = por %p433, %p434
    %p437 = scmp.ne.s32.totalorder %s422, %s436
    %p438 = scmp.eq.s32.totalorder %s31, 0
    %p439 = por %p437, %p438
    %s441 = sadd.s32 %s440, 1
    %p444 = scmp.eq.s32.totalorder %s25, 1
    %p445 = scmp.ne.s32.totalorder %s440, %s442
    %p446 = scmp.eq.s32.totalorder %s25, 0
    %p447 = por %p445, %p446
    %p448 = scmp.ne.s32.totalorder %s440, %s442
    %p449 = scmp.eq.s32.totalorder %s30, 1
    %p450 = por %p448, %p449
    %p451 = scmp.ne.s32.totalorder %s442, %s443
    %p452 = scmp.eq.s32.totalorder %s30, 0
    %p453 = por %p451, %p452
    %p454 = scmp.ne.s32.totalorder %s442, %s443
    %p455 = scmp.eq.s32.totalorder %s31, 1
    %p456 = por %p454, %p455
    %p458 = scmp.ne.s32.totalorder %s443, %s457
    %p459 = scmp.eq.s32.totalorder %s31, 0
    %p460 = por %p458, %p459
    %s461 = ssub.s32 %s32, %s44
    %s462 = ssub.s32 %s33, %s40
    %s463 = sor.u32 %s461, %s462
    %p464 = scmp.eq.s32.totalorder %s463, 0
    %s466 = sadd.s32 %s465, 1
    %s467 = scalar_select %p464, %s465, %s466
    %p470 = pneg %p464
    %p471 = scmp.eq.s32.totalorder %s25, 1
    %p472 = por %p470, %p471
    %p473 = scmp.ne.s32.totalorder %s465, %s468
    %p474 = scmp.eq.s32.totalorder %s25, 0
    %p475 = por %p473, %p474
    %p476 = scmp.ne.s32.totalorder %s465, %s468
    %p477 = scmp.eq.s32.totalorder %s30, 1
    %p478 = por %p476, %p477
    %p479 = scmp.ne.s32.totalorder %s468, %s469
    %p480 = scmp.eq.s32.totalorder %s30, 0
    %p481 = por %p479, %p480
    %p482 = scmp.ne.s32.totalorder %s468, %s469
    %p483 = scmp.eq.s32.totalorder %s31, 1
    %p484 = por %p482, %p483
    %p486 = scmp.ne.s32.totalorder %s469, %s485
    %p487 = scmp.eq.s32.totalorder %s31, 0
    %p488 = por %p486, %p487
    %p489 = scmp.le.s32.totalorder 1, %s25
    %p490 = scmp.lt.s32.totalorder %s25, 3
    %p491 = pnand %p489, %p490
    %p492 = pneg %p491
    // Predicated region
    $region9: #{contrastive_bert_forward.4} parent=5 // pred_check
      _
    $region10: #{contrastive_bert_forward.4} parent=5 // pred_check_branch
      %494 = sbr.rel (%p491) target = $region12
    $region11: #{contrastive_bert_forward.4} parent=5 // pred_region
      %s495 = ssub.s32 %s25, 1
      // Predicated region
      $region13: #{contrastive_bert_forward.4} parent=11 // pred_check
        %p496 = pneg %p138
      $region14: #{contrastive_bert_forward.4} parent=11 // pred_check_branch
        %498 = sbr.rel (%p496) target = $region16
      $region15: #{contrastive_bert_forward.4} parent=11 // pred_region
        _
      $region16: #{contrastive_bert_forward.4} parent=11 // pred_fallthru
        _
      // Predicated region
      $region17: #{contrastive_bert_forward.4} parent=11 // pred_check
        %p499 = pneg %p159
      $region18: #{contrastive_bert_forward.4} parent=11 // pred_check_branch
        %501 = sbr.rel (%p499) target = $region20
      $region19: #{contrastive_bert_forward.4} parent=11 // pred_region
        _
      $region20: #{contrastive_bert_forward.4} parent=11 // pred_fallthru
        _
      // Predicated region
      $region21: #{contrastive_bert_forward.4} parent=11 // pred_check
        %p502 = pneg %p180
      $region22: #{contrastive_bert_forward.4} parent=11 // pred_check_branch
        %504 = sbr.rel (%p502) target = $region24
      $region23: #{contrastive_bert_forward.4} parent=11 // pred_region
        _
      $region24: #{contrastive_bert_forward.4} parent=11 // pred_fallthru
        _
      // Predicated region
      $region25: #{contrastive_bert_forward.4} parent=11 // pred_check
        %p505 = pneg %p201
      $region26: #{contrastive_bert_forward.4} parent=11 // pred_check_branch
        %507 = sbr.rel (%p505) target = $region28
      $region27: #{contrastive_bert_forward.4} parent=11 // pred_region
        _
      $region28: #{contrastive_bert_forward.4} parent=11 // pred_fallthru
        _
      // Predicated region
      $region29: #{contrastive_bert_forward.4} parent=11 // pred_check
        %p508 = pneg %p222
      $region30: #{contrastive_bert_forward.4} parent=11 // pred_check_branch
        %510 = sbr.rel (%p508) target = $region32
      $region31: #{contrastive_bert_forward.4} parent=11 // pred_region
        _
      $region32: #{contrastive_bert_forward.4} parent=11 // pred_fallthru
        _
      // Predicated region
      $region33: #{contrastive_bert_forward.4} parent=11 // pred_check
        %p511 = pneg %p243
      $region34: #{contrastive_bert_forward.4} parent=11 // pred_check_branch
        %513 = sbr.rel (%p511) target = $region36
      $region35: #{contrastive_bert_forward.4} parent=11 // pred_region
        _
      $region36: #{contrastive_bert_forward.4} parent=11 // pred_fallthru
        _
      // Predicated region
      $region37: #{contrastive_bert_forward.4} parent=11 // pred_check
        %p514 = pneg %p264
      $region38: #{contrastive_bert_forward.4} parent=11 // pred_check_branch
        %516 = sbr.rel (%p514) target = $region40
      $region39: #{contrastive_bert_forward.4} parent=11 // pred_region
        _
      $region40: #{contrastive_bert_forward.4} parent=11 // pred_fallthru
        _
      // Predicated region
      $region41: #{contrastive_bert_forward.4} parent=11 // pred_check
        %p517 = pneg %p285
      $region42: #{contrastive_bert_forward.4} parent=11 // pred_check_branch
        %519 = sbr.rel (%p517) target = $region44
      $region43: #{contrastive_bert_forward.4} parent=11 // pred_region
        _
      $region44: #{contrastive_bert_forward.4} parent=11 // pred_fallthru
        _
      // Predicated region
      $region45: #{contrastive_bert_forward.4} parent=11 // pred_check
        %p520 = pneg %p306
      $region46: #{contrastive_bert_forward.4} parent=11 // pred_check_branch
        %522 = sbr.rel (%p520) target = $region48
      $region47: #{contrastive_bert_forward.4} parent=11 // pred_region
        _
      $region48: #{contrastive_bert_forward.4} parent=11 // pred_fallthru
        _
      // Predicated region
      $region49: #{contrastive_bert_forward.4} parent=11 // pred_check
        %p523 = pneg %p327
      $region50: #{contrastive_bert_forward.4} parent=11 // pred_check_branch
        %525 = sbr.rel (%p523) target = $region52
      $region51: #{contrastive_bert_forward.4} parent=11 // pred_region
        _
      $region52: #{contrastive_bert_forward.4} parent=11 // pred_fallthru
        _
      // Predicated region
      $region53: #{contrastive_bert_forward.4} parent=11 // pred_check
        %p526 = pneg %p348
      $region54: #{contrastive_bert_forward.4} parent=11 // pred_check_branch
        %528 = sbr.rel (%p526) target = $region56
      $region55: #{contrastive_bert_forward.4} parent=11 // pred_region
        _
      $region56: #{contrastive_bert_forward.4} parent=11 // pred_fallthru
        _
      // Predicated region
      $region57: #{contrastive_bert_forward.4} parent=11 // pred_check
        %p529 = pneg %p369
      $region58: #{contrastive_bert_forward.4} parent=11 // pred_check_branch
        %531 = sbr.rel (%p529) target = $region60
      $region59: #{contrastive_bert_forward.4} parent=11 // pred_region
        _
      $region60: #{contrastive_bert_forward.4} parent=11 // pred_fallthru
        _
      // Predicated region
      $region61: #{contrastive_bert_forward.4} parent=11 // pred_check
        %p532 = pneg %p390
      $region62: #{contrastive_bert_forward.4} parent=11 // pred_check_branch
        %534 = sbr.rel (%p532) target = $region64
      $region63: #{contrastive_bert_forward.4} parent=11 // pred_region
        _
      $region64: #{contrastive_bert_forward.4} parent=11 // pred_fallthru
        _
      // Predicated region
      $region65: #{contrastive_bert_forward.4} parent=11 // pred_check
        %p535 = pneg %p411
      $region66: #{contrastive_bert_forward.4} parent=11 // pred_check_branch
        %537 = sbr.rel (%p535) target = $region68
      $region67: #{contrastive_bert_forward.4} parent=11 // pred_region
        _
      $region68: #{contrastive_bert_forward.4} parent=11 // pred_fallthru
        _
      // Predicated region
      $region69: #{contrastive_bert_forward.4} parent=11 // pred_check
        %p538 = pneg %p432
      $region70: #{contrastive_bert_forward.4} parent=11 // pred_check_branch
        %540 = sbr.rel (%p538) target = $region72
      $region71: #{contrastive_bert_forward.4} parent=11 // pred_region
        _
      $region72: #{contrastive_bert_forward.4} parent=11 // pred_fallthru
        _
      // Predicated region
      $region73: #{contrastive_bert_forward.4} parent=11 // pred_check
        %p541 = pneg %p453
      $region74: #{contrastive_bert_forward.4} parent=11 // pred_check_branch
        %543 = sbr.rel (%p541) target = $region76
      $region75: #{contrastive_bert_forward.4} parent=11 // pred_region
        _
      $region76: #{contrastive_bert_forward.4} parent=11 // pred_fallthru
        _
    $region12: #{contrastive_bert_forward.4} parent=5 // pred_fallthru
      _
    %p544 = scmp.lt.s32.totalorder %s25, 2
    // Predicated region
    $region77: #{contrastive_bert_forward.4} parent=5 // pred_check
      %p545 = pneg %p544
    $region78: #{contrastive_bert_forward.4} parent=5 // pred_check_branch
      %547 = sbr.rel (%p545) target = $region80
    $region79: #{contrastive_bert_forward.4} parent=5 // pred_region
      // Predicated region
      $region81: #{contrastive_bert_forward.4} parent=79 // pred_check
        %p548 = pneg %p59
      $region82: #{contrastive_bert_forward.4} parent=79 // pred_check_branch
        %550 = sbr.rel (%p548) target = $region84
      $region83: #{contrastive_bert_forward.4} parent=79 // pred_region
        %p551 = scmp.lt.s32.totalorder %s32, 1
        %s552 = scalar_select %p551, %s32, 1
        %p553 = scmp.lt.s32.totalorder %s33, 0
        %s554 = scalar_select %p553, %s33, 0
        %s555 = sadd.s32 %s554, %s552
        %s556 = smul.addr %s555, 8
        %s557 = scalar_lea.vmem %s0, %s556
      $region84: #{contrastive_bert_forward.4} parent=79 // pred_fallthru
        _
      // Predicated region
      $region85: #{contrastive_bert_forward.4} parent=79 // pred_check
        %p558 = pneg %p85
      $region86: #{contrastive_bert_forward.4} parent=79 // pred_check_branch
        %560 = sbr.rel (%p558) target = $region88
      $region87: #{contrastive_bert_forward.4} parent=79 // pred_region
        %p561 = scmp.lt.s32.totalorder %s32, 1
        %s562 = scalar_select %p561, %s32, 1
        %s563 = smul.addr %s562, 8
        %s564 = scalar_lea.vmem %s1, %s563
      $region88: #{contrastive_bert_forward.4} parent=79 // pred_fallthru
        _
      // Predicated region
      $region89: #{contrastive_bert_forward.4} parent=79 // pred_check
        %p565 = pneg %p111
      $region90: #{contrastive_bert_forward.4} parent=79 // pred_check_branch
        %567 = sbr.rel (%p565) target = $region92
      $region91: #{contrastive_bert_forward.4} parent=79 // pred_region
        %p568 = scmp.lt.s32.totalorder %s32, 1
        %s569 = scalar_select %p568, %s32, 1
        %s570 = scalar_lea.vmem %s2, %s569
      $region92: #{contrastive_bert_forward.4} parent=79 // pred_fallthru
        _
    $region80: #{contrastive_bert_forward.4} parent=5 // pred_fallthru
      _
    %p571 = scmp.le.s32.totalorder 1, %s25
    %p572 = scmp.lt.s32.totalorder %s25, 3
    %p573 = pnand %p571, %p572
    %p574 = pneg %p573
    // Predicated region
    $region93: #{contrastive_bert_forward.4} parent=5 // pred_check
      _
    $region94: #{contrastive_bert_forward.4} parent=5 // pred_check_branch
      %576 = sbr.rel (%p573) target = $region96
    $region95: #{contrastive_bert_forward.4} parent=5 // pred_region
      %s577 = ssub.s32 %s25, 1
      %p578 = scmp.lt.s32.totalorder %s34, 1
      %s579 = scalar_select %p578, %s34, 1
      %p580 = scmp.lt.s32.totalorder %s35, 0
      %s581 = scalar_select %p580, %s35, 0
      %s582 = sadd.s32 %s581, %s579
      %s583 = smul.addr %s582, 8
      %s584 = scalar_lea.vmem %s0, %s583
      %p585 = pneg %p65
      %p586 = pneg %p62
      %p587 = scmp.lt.s32.totalorder %s34, 1
      %s588 = scalar_select %p587, %s34, 1
      %s589 = smul.addr %s588, 8
      %s590 = scalar_lea.vmem %s1, %s589
      %p591 = pneg %p91
      %p592 = pneg %p88
      %p593 = scmp.lt.s32.totalorder %s34, 1
      %s594 = scalar_select %p593, %s34, 1
      %s595 = scalar_lea.vmem %s2, %s594
      %p596 = pneg %p117
      %p597 = pneg %p114
      %p598 = pneg %p138
      %p599 = pneg %p135
      %p600 = pneg %p159
      %p601 = pneg %p156
      %p602 = pneg %p180
      %p603 = pneg %p177
      %p604 = pneg %p201
      %p605 = pneg %p198
      %p606 = pneg %p222
      %p607 = pneg %p219
      %p608 = pneg %p243
      %p609 = pneg %p240
      %p610 = pneg %p264
      %p611 = pneg %p261
      %p612 = pneg %p285
      %p613 = pneg %p282
      %p614 = pneg %p306
      %p615 = pneg %p303
      %p616 = pneg %p327
      %p617 = pneg %p324
      %p618 = pneg %p348
      %p619 = pneg %p345
      %p620 = pneg %p369
      %p621 = pneg %p366
      %p622 = pneg %p390
      %p623 = pneg %p387
      %p624 = pneg %p411
      %p625 = pneg %p408
      %p626 = pneg %p432
      %p627 = pneg %p429
      %p628 = pneg %p453
      %p629 = pneg %p450
      %p630 = pneg %p481
      %p631 = pneg %p478
      %p632 = scmp.lt.s32.totalorder %s34, 1
      %s633 = scalar_select %p632, %s34, 1
      %p634 = scmp.lt.s32.totalorder %s35, 0
      %s635 = scalar_select %p634, %s35, 0
      %s636 = sadd.s32 %s635, %s633
      %s637 = smul.addr %s636, 8
      %s638 = scalar_lea.vmem %s19, %s637
      %p639 = scmp.lt.s32.totalorder %s34, 1
      %s640 = scalar_select %p639, %s34, 1
      %p641 = scmp.lt.s32.totalorder %s35, 0
      %s642 = scalar_select %p641, %s35, 0
      %s643 = sadd.s32 %s642, %s640
      %s644 = smul.addr %s643, 8
      %s645 = scalar_lea.vmem %s0, %s644
      %p646 = scmp.lt.s32.totalorder %s34, 1
      %s647 = scalar_select %p646, %s34, 1
      %s648 = smul.addr %s647, 8
      %s649 = scalar_lea.vmem %s1, %s648
      %p650 = scmp.lt.s32.totalorder %s34, 1
      %s651 = scalar_select %p650, %s34, 1
      %s652 = scalar_lea.vmem %s2, %s651
      %p653 = scmp.lt.s32.totalorder %s34, 1
      %s654 = scalar_select %p653, %s34, 1
      %p655 = scmp.lt.s32.totalorder %s35, 0
      %s656 = scalar_select %p655, %s35, 0
      %s657 = sadd.s32 %s656, %s654
      %s658 = smul.addr %s657, 8
      %s659 = scalar_lea.vmem %s19, %s658
      %p661 = scmp.eq.s32.totalorder %s35, 0
      // Predicated region
      $region97: #{contrastive_bert_forward.4} parent=95 // pred_check
        %p662 = pneg %p661
      $region98: #{contrastive_bert_forward.4} parent=95 // pred_check_branch
        %664 = sbr.rel (%p662) target = $region100
      $region99: #{contrastive_bert_forward.4} parent=95 // pred_region
        %v665 = vld [vmem:[%s649] sm:$0xff]
        %v666 = vpack.c.bf16 %v665, %v665
        %v667 = vld [vmem:[%s5] sm:$0xf]
        %v668 = vld [vmem:[%s5 + $0x4] sm:$0xf]
        %v669 = vld [vmem:[%s5 + $0x8] sm:$0xf]
        %v670 = vld [vmem:[%s5 + $0xc] sm:$0xf]
        %v671 = vld [vmem:[%s6] sm:$0x1]
        %v673 = vperm.slane %v671, 0
        %v679 = vunpack.c.l.b16 %v667
        %v680 = vunpack.c.l.b16 %v668
        %v681 = vunpack.c.l.b16 %v669
        %v682 = vunpack.c.l.b16 %v670
        %v683 = vpack.c.b16 %v680, %v679
        %v684 = vpack.c.b16 %v682, %v681
        %vm687 = vcmask 261120
        %v689 = vsel %vm687, %v666, 0
        %691 = vmatpush.bf16.msra.mxu0 0
        %692 = vmatpush.bf16.msra.mxu0 0
        %693 = vmatpush.bf16.msra.mxu0 0
        %694 = vmatpush.bf16.msra.mxu0 0
        %695 = vmatpush.bf16.msra.mxu0 0
        %696 = vmatpush.bf16.msra.mxu0 0
        %697 = vmatpush.bf16.msra.mxu0 %v684
        %698 = vmatpush.bf16.msra.mxu0 %v683
        %699 = vmatmul.bf16.gmra.mxu0 %v689
        %v700 = vpop.f32.mrf.mxu0
        %v701 = vadd.f32 %v673, %v700
        %v702 = vpop.f32.mrf.mxu0
        %703 = vdwg.mxu0
        %v704 = vld [vmem:[%s7] sm:$0xf]
        %v705 = vld [vmem:[%s7 + $0x4] sm:$0xf]
        %v706 = vld [vmem:[%s7 + $0x8] sm:$0xf]
        %v707 = vld [vmem:[%s7 + $0xc] sm:$0xf]
        %v708 = vld [vmem:[%s8] sm:$0x1]
        %v710 = vperm.slane %v708, 0
        %v716 = vunpack.c.l.b16 %v704
        %v717 = vunpack.c.l.b16 %v705
        %v718 = vunpack.c.l.b16 %v706
        %v719 = vunpack.c.l.b16 %v707
        %v720 = vpack.c.b16 %v717, %v716
        %v721 = vpack.c.b16 %v719, %v718
        %724 = vmatpush.bf16.msra.mxu0 0
        %725 = vmatpush.bf16.msra.mxu0 0
        %726 = vmatpush.bf16.msra.mxu0 0
        %727 = vmatpush.bf16.msra.mxu0 0
        %728 = vmatpush.bf16.msra.mxu0 0
        %729 = vmatpush.bf16.msra.mxu0 0
        %730 = vmatpush.bf16.msra.mxu0 %v721
        %731 = vmatpush.bf16.msra.mxu0 %v720
        %732 = vmatmul.bf16.gmra.mxu0 %v689
        %v733 = vpop.f32.mrf.mxu0
        %v734 = vadd.f32 %v710, %v733
        %v735 = vpop.f32.mrf.mxu0
        %736 = vdwg.mxu0
        %v737 = vpack.c.bf16 %v701, %v701
        %vm738 = vcmask 125952
        %739 = vst.msk [vmem:[#allocation2] sm:$0xf] %vm738, %v737
        %v740 = vpack.c.bf16 %v734, %v734
        %741 = vst.msk [vmem:[#allocation3] sm:$0xf] %vm738, %v740
        %s742 = scalar_lea.vmem %s5, 16
        %v743 = vld [vmem:[%s742] sm:$0xf]
        %v744 = vld [vmem:[%s742 + $0x4] sm:$0xf]
        %v745 = vld [vmem:[%s742 + $0x8] sm:$0xf]
        %v746 = vld [vmem:[%s742 + $0xc] sm:$0xf]
        %s747 = scalar_lea.vmem %s6, 1
        %v748 = vld [vmem:[%s747] sm:$0x1]
        %v750 = vperm.slane %v748, 0
        %v756 = vunpack.c.l.b16 %v743
        %v757 = vunpack.c.l.b16 %v744
        %v758 = vunpack.c.l.b16 %v745
        %v759 = vunpack.c.l.b16 %v746
        %v760 = vpack.c.b16 %v757, %v756
        %v761 = vpack.c.b16 %v759, %v758
        %764 = vmatpush.bf16.msra.mxu0 0
        %765 = vmatpush.bf16.msra.mxu0 0
        %766 = vmatpush.bf16.msra.mxu0 0
        %767 = vmatpush.bf16.msra.mxu0 0
        %768 = vmatpush.bf16.msra.mxu0 0
        %769 = vmatpush.bf16.msra.mxu0 0
        %770 = vmatpush.bf16.msra.mxu0 %v761
        %771 = vmatpush.bf16.msra.mxu0 %v760
        %772 = vmatmul.bf16.gmra.mxu0 %v689
        %v773 = vpop.f32.mrf.mxu0
        %v774 = vadd.f32 %v750, %v773
        %v775 = vpop.f32.mrf.mxu0
        %776 = vdwg.mxu0
        %s777 = scalar_lea.vmem %s7, 16
        %v778 = vld [vmem:[%s777] sm:$0xf]
        %v779 = vld [vmem:[%s777 + $0x4] sm:$0xf]
        %v780 = vld [vmem:[%s777 + $0x8] sm:$0xf]
        %v781 = vld [vmem:[%s777 + $0xc] sm:$0xf]
        %s782 = scalar_lea.vmem %s8, 1
        %v783 = vld [vmem:[%s782] sm:$0x1]
        %v785 = vperm.slane %v783, 0
        %v791 = vunpack.c.l.b16 %v778
        %v792 = vunpack.c.l.b16 %v779
        %v793 = vunpack.c.l.b16 %v780
        %v794 = vunpack.c.l.b16 %v781
        %v795 = vpack.c.b16 %v792, %v791
        %v796 = vpack.c.b16 %v794, %v793
        %799 = vmatpush.bf16.msra.mxu0 0
        %800 = vmatpush.bf16.msra.mxu0 0
        %801 = vmatpush.bf16.msra.mxu0 0
        %802 = vmatpush.bf16.msra.mxu0 0
        %803 = vmatpush.bf16.msra.mxu0 0
        %804 = vmatpush.bf16.msra.mxu0 0
        %805 = vmatpush.bf16.msra.mxu0 %v796
        %806 = vmatpush.bf16.msra.mxu0 %v795
        %807 = vmatmul.bf16.gmra.mxu0 %v689
        %v808 = vpop.f32.mrf.mxu0
        %v809 = vadd.f32 %v785, %v808
        %v810 = vpop.f32.mrf.mxu0
        %811 = vdwg.mxu0
        %v812 = vpack.c.bf16 %v774, %v774
        %s813 = scalar_lea.vmem [#allocation2], 4
        %814 = vst.msk [vmem:[%s813] sm:$0xf] %vm738, %v812
        %v815 = vpack.c.bf16 %v809, %v809
        %s816 = scalar_lea.vmem [#allocation3], 4
        %817 = vst.msk [vmem:[%s816] sm:$0xf] %vm738, %v815
      $region100: #{contrastive_bert_forward.4} parent=95 // pred_fallthru
        _
      %v818 = vld [vmem:[%s645] sm:$0xff]
      %v819 = vld [vmem:[%s652] sm:$0x1]
      %v820 = vpack.c.bf16 %v818, %v818
      %v821 = vld [vmem:[%s3] sm:$0xf]
      %v822 = vld [vmem:[%s3 + $0x4] sm:$0xf]
      %v823 = vld [vmem:[%s3 + $0x8] sm:$0xf]
      %v824 = vld [vmem:[%s3 + $0xc] sm:$0xf]
      %v825 = vld [vmem:[%s4] sm:$0x1]
      %v827 = vperm.slane %v825, 0
      %v833 = vunpack.c.l.b16 %v821
      %v834 = vunpack.c.l.b16 %v822
      %v835 = vunpack.c.l.b16 %v823
      %v836 = vunpack.c.l.b16 %v824
      %v837 = vpack.c.b16 %v834, %v833
      %v838 = vpack.c.b16 %v836, %v835
      %vm841 = vcmask 261120
      %v843 = vsel %vm841, %v820, 0
      %845 = vmatpush.bf16.msra.mxu0 0
      %846 = vmatpush.bf16.msra.mxu0 0
      %847 = vmatpush.bf16.msra.mxu0 0
      %848 = vmatpush.bf16.msra.mxu0 0
      %849 = vmatpush.bf16.msra.mxu0 0
      %850 = vmatpush.bf16.msra.mxu0 0
      %851 = vmatpush.bf16.msra.mxu0 %v838
      %852 = vmatpush.bf16.msra.mxu0 %v837
      %853 = vmatmul.bf16.gmra.mxu0 %v843
      %v854 = vpop.f32.mrf.mxu0
      %v855 = vadd.f32 %v827, %v854
      %v856 = vpop.f32.mrf.mxu0
      %857 = vdwg.mxu0
      %v858 = vpack.c.bf16 %v855, %v855
      %v859 = vld [vmem:[#allocation2] sm:$0xf]
      %v861 = vperm.slane %v819, 0
      %vm863 = vcmask 130048
      %v865 = vsel %vm863, %v858, 0
      %v868 = vsel %vm863, %v859, 0
      %870 = vmatpush.bf16.xpose.msra.mxu0 0
      %871 = vmatpush.bf16.xpose.msra.mxu0 0
      %872 = vmatpush.bf16.xpose.msra.mxu0 0
      %873 = vmatpush.bf16.xpose.msra.mxu0 0
      %874 = vmatpush.bf16.xpose.msra.mxu0 0
      %875 = vmatpush.bf16.xpose.msra.mxu0 0
      %876 = vmatpush.bf16.xpose.msra.mxu0 0
      %877 = vmatpush.bf16.xpose.msra.mxu0 %v868
      %878 = vmatmul.bf16.gmra.mxu0 %v865
      %v879 = vpop.f32.mrf.mxu0
      %v880 = vadd.f32 %v861, %v879
      %v881 = vpop.f32.mrf.mxu0
      %882 = vdwg.mxu0
      %vm883 = vcmask 64512
      %v884 = vsel %vm883, %v880, -inf
      %885 = vmax.xlane.f32.xlu0 %v884
      %v886 = vpop.xlane.xlu0 %885
      %v887 = vsub.f32 %v880, %v886
      %v888 = vmul.f32 %v887, 1.442695
      %v889 = vpow.pop %v888
      %v890 = vsel %vm883, %v889, 0.0
      %891 = vadd.xlane.f32.xlu0 %v890
      %v892 = vpop.xlane.xlu0 %891
      %v893 = vrcp.pop %v892
      %v894 = vmul.f32 %v889, %v893
      %v895 = vpack.c.bf16 %v894, %v894
      %v896 = vld [vmem:[#allocation3] sm:$0xf]
      %v898 = vsel %vm883, %v895, 0
      %vm900 = vcmask 1043456
      %v902 = vsel %vm900, %v896, 0
      %904 = vmatpush.bf16.msra.mxu0 0
      %905 = vmatpush.bf16.msra.mxu0 0
      %906 = vmatpush.bf16.msra.mxu0 0
      %907 = vmatpush.bf16.msra.mxu0 0
      %908 = vmatpush.bf16.msra.mxu0 0
      %909 = vmatpush.bf16.msra.mxu0 0
      %910 = vmatpush.bf16.msra.mxu0 0
      %911 = vmatpush.bf16.msra.mxu0 %v902
      %912 = vmatmul.bf16.gmra.mxu0 %v898
      %v913 = vpop.f32.mrf.mxu0
      %v914 = vadd.f32 0.0, %v913
      %v915 = vpop.f32.mrf.mxu0
      %916 = vdwg.mxu0
      %v917 = vpack.c.bf16 %v914, %v914
      %v918 = vld [vmem:[%s9] sm:$0xf]
      %v919 = vld [vmem:[%s9 + $0x4] sm:$0xf]
      %s920 = scalar_lea.vmem %s3, 16
      %v921 = vld [vmem:[%s920] sm:$0xf]
      %v922 = vld [vmem:[%s920 + $0x4] sm:$0xf]
      %v923 = vld [vmem:[%s920 + $0x8] sm:$0xf]
      %v924 = vld [vmem:[%s920 + $0xc] sm:$0xf]
      %s925 = scalar_lea.vmem %s4, 1
      %v926 = vld [vmem:[%s925] sm:$0x1]
      %v928 = vperm.slane %v926, 0
      %v934 = vunpack.c.l.b16 %v921
      %v935 = vunpack.c.l.b16 %v922
      %v936 = vunpack.c.l.b16 %v923
      %v937 = vunpack.c.l.b16 %v924
      %v938 = vpack.c.b16 %v935, %v934
      %v939 = vpack.c.b16 %v937, %v936
      %942 = vmatpush.bf16.msra.mxu0 0
      %943 = vmatpush.bf16.msra.mxu0 0
      %944 = vmatpush.bf16.msra.mxu0 0
      %945 = vmatpush.bf16.msra.mxu0 0
      %946 = vmatpush.bf16.msra.mxu0 0
      %947 = vmatpush.bf16.msra.mxu0 0
      %948 = vmatpush.bf16.msra.mxu0 %v939
      %949 = vmatpush.bf16.msra.mxu0 %v938
      %950 = vmatmul.bf16.gmra.mxu0 %v843
      %v951 = vpop.f32.mrf.mxu0
      %v952 = vadd.f32 %v928, %v951
      %v953 = vpop.f32.mrf.mxu0
      %954 = vdwg.mxu0
      %v955 = vpack.c.bf16 %v952, %v952
      %s956 = scalar_lea.vmem [#allocation2], 4
      %v957 = vld [vmem:[%s956] sm:$0xf]
      %v959 = vsel %vm863, %v955, 0
      %v962 = vsel %vm863, %v957, 0
      %964 = vmatpush.bf16.xpose.msra.mxu0 0
      %965 = vmatpush.bf16.xpose.msra.mxu0 0
      %966 = vmatpush.bf16.xpose.msra.mxu0 0
      %967 = vmatpush.bf16.xpose.msra.mxu0 0
      %968 = vmatpush.bf16.xpose.msra.mxu0 0
      %969 = vmatpush.bf16.xpose.msra.mxu0 0
      %970 = vmatpush.bf16.xpose.msra.mxu0 0
      %971 = vmatpush.bf16.xpose.msra.mxu0 %v962
      %972 = vmatmul.bf16.gmra.mxu0 %v959
      %v973 = vpop.f32.mrf.mxu0
      %v974 = vadd.f32 %v861, %v973
      %v975 = vpop.f32.mrf.mxu0
      %976 = vdwg.mxu0
      %v977 = vsel %vm883, %v974, -inf
      %978 = vmax.xlane.f32.xlu0 %v977
      %v979 = vpop.xlane.xlu0 %978
      %v980 = vsub.f32 %v974, %v979
      %v981 = vmul.f32 %v980, 1.442695
      %v982 = vpow.pop %v981
      %v983 = vsel %vm883, %v982, 0.0
      %984 = vadd.xlane.f32.xlu0 %v983
      %v985 = vpop.xlane.xlu0 %984
      %v986 = vrcp.pop %v985
      %v987 = vmul.f32 %v982, %v986
      %v988 = vpack.c.bf16 %v987, %v987
      %s989 = scalar_lea.vmem [#allocation3], 4
      %v990 = vld [vmem:[%s989] sm:$0xf]
      %v992 = vsel %vm883, %v988, 0
      %v995 = vsel %vm900, %v990, 0
      %997 = vmatpush.bf16.msra.mxu0 0
      %998 = vmatpush.bf16.msra.mxu0 0
      %999 = vmatpush.bf16.msra.mxu0 0
      %1000 = vmatpush.bf16.msra.mxu0 0
      %1001 = vmatpush.bf16.msra.mxu0 0
      %1002 = vmatpush.bf16.msra.mxu0 0
      %1003 = vmatpush.bf16.msra.mxu0 0
      %1004 = vmatpush.bf16.msra.mxu0 %v995
      %1005 = vmatmul.bf16.gmra.mxu0 %v992
      %v1006 = vpop.f32.mrf.mxu0
      %v1007 = vadd.f32 0.0, %v1006
      %v1008 = vpop.f32.mrf.mxu0
      %1009 = vdwg.mxu0
      %v1010 = vpack.c.bf16 %v1007, %v1007
      %s1011 = scalar_lea.vmem %s9, 8
      %v1012 = vld [vmem:[%s1011] sm:$0xf]
      %v1013 = vld [vmem:[%s1011 + $0x4] sm:$0xf]
      %v1016 = vunpack.c.l.b16 %v1012
      %v1017 = vunpack.c.l.b16 %v1013
      %v1018 = vpack.c.b16 %v1017, %v1016
      %v1021 = vsel %vm863, %v1010, 0
      %1023 = vmatpush.bf16.msra.mxu0 0
      %1024 = vmatpush.bf16.msra.mxu0 0
      %1025 = vmatpush.bf16.msra.mxu0 0
      %1026 = vmatpush.bf16.msra.mxu0 0
      %1027 = vmatpush.bf16.msra.mxu0 0
      %1028 = vmatpush.bf16.msra.mxu0 0
      %1029 = vmatpush.bf16.msra.mxu0 0
      %1030 = vmatpush.bf16.msra.mxu0 %v1018
      %1031 = vmatmul.bf16.gmra.mxu0 %v1021
      %v1032 = vpop.f32.mrf.mxu0
      %v1033 = vadd.f32 0.0, %v1032
      %v1034 = vpop.f32.mrf.mxu0
      %1035 = vdwg.mxu0
      %v1038 = vunpack.c.l.b16 %v918
      %v1039 = vunpack.c.l.b16 %v919
      %v1040 = vpack.c.b16 %v1039, %v1038
      %v1043 = vsel %vm863, %v917, 0
      %1045 = vmatpush.bf16.msra.mxu0 0
      %1046 = vmatpush.bf16.msra.mxu0 0
      %1047 = vmatpush.bf16.msra.mxu0 0
      %1048 = vmatpush.bf16.msra.mxu0 0
      %1049 = vmatpush.bf16.msra.mxu0 0
      %1050 = vmatpush.bf16.msra.mxu0 0
      %1051 = vmatpush.bf16.msra.mxu0 0
      %1052 = vmatpush.bf16.msra.mxu0 %v1040
      %1053 = vmatmul.bf16.gmra.mxu0 %v1043
      %v1054 = vpop.f32.mrf.mxu0
      %v1055 = vadd.f32 %v1033, %v1054
      %v1056 = vpop.f32.mrf.mxu0
      %1057 = vdwg.mxu0
      %v1058 = vld [vmem:[%s10] sm:$0x1]
      %v1060 = vperm.slane %v1058, 0
      %v1062 = vadd.f32 %v1055, %v1060
      %v1063 = vadd.f32 %v818, %v1062
      %v1064 = vld [vmem:[%s11] sm:$0x1]
      %v1065 = vld [vmem:[%s12] sm:$0x1]
      %v1066 = vsel %vm841, %v1063, 0.0
      %1067 = vadd.xlane.f32.xlu0 %v1066
      %v1068 = vpop.xlane.xlu0 %1067
      %v1069 = vrcp.pop 32.0
      %v1070 = vmul.f32 32.0, %v1069
      %v1071 = vsub.f32 1.0, %v1070
      %v1072 = vmul.f32 %v1069, %v1071
      %v1073 = vadd.f32 %v1069, %v1072
      %vm1074 = vweird.f32 %v1069
      %v1075 = vsel %vm1074, %v1069, %v1073
      %v1076 = vmul.f32 %v1068, %v1075
      %v1077 = vsub.f32 %v1063, %v1076
      %v1078 = vmul.f32 %v1077, %v1077
      %v1079 = vsel %vm841, %v1078, 0.0
      %1080 = vadd.xlane.f32.xlu0 %v1079
      %v1081 = vpop.xlane.xlu0 %1080
      %v1082 = vmul.f32 %v1081, %v1075
      %v1083 = vadd.f32 %v1082, 1e-12
      %v1084 = vrsqrt.pop %v1083
      %v1085 = vmul.f32 %v1084, %v1083
      %v1086 = vmul.f32 %v1085, %v1084
      %v1087 = vmul.f32 0.5, %v1086
      %v1088 = vsub.f32 1.5, %v1087
      %v1089 = vmul.f32 %v1084, %v1088
      %vm1090 = vweird.f32 %v1083
      %vm1091 = vweird.f32 %v1084
      %vm1092 = vmor %vm1090, %vm1091
      %v1093 = vsel %vm1092, %v1084, %v1089
      %v1094 = vmul.f32 %v1077, %v1093
      %v1096 = vperm.slane %v1064, 0
      %v1098 = vmul.f32 %v1094, %v1096
      %v1100 = vperm.slane %v1065, 0
      %v1102 = vadd.f32 %v1098, %v1100
      %v1103 = vpack.c.bf16 %v1102, %v1102
      %v1104 = vld [vmem:[%s13] sm:$0xf]
      %v1105 = vld [vmem:[%s13 + $0x4] sm:$0xf]
      %v1106 = vld [vmem:[%s13 + $0x8] sm:$0xf]
      %v1107 = vld [vmem:[%s13 + $0xc] sm:$0xf]
      %v1108 = vld [vmem:[%s14] sm:$0x1]
      %v1110 = vperm.slane %v1108, 0
      %v1116 = vunpack.c.l.b16 %v1104
      %v1117 = vunpack.c.l.b16 %v1105
      %v1118 = vunpack.c.l.b16 %v1106
      %v1119 = vunpack.c.l.b16 %v1107
      %v1120 = vpack.c.b16 %v1117, %v1116
      %v1121 = vpack.c.b16 %v1119, %v1118
      %v1125 = vsel %vm841, %v1103, 0
      %1127 = vmatpush.bf16.msra.mxu0 0
      %1128 = vmatpush.bf16.msra.mxu0 0
      %1129 = vmatpush.bf16.msra.mxu0 0
      %1130 = vmatpush.bf16.msra.mxu0 0
      %1131 = vmatpush.bf16.msra.mxu0 0
      %1132 = vmatpush.bf16.msra.mxu0 0
      %1133 = vmatpush.bf16.msra.mxu0 %v1121
      %1134 = vmatpush.bf16.msra.mxu0 %v1120
      %1135 = vmatmul.bf16.gmra.mxu0 %v1125
      %v1136 = vpop.f32.mrf.mxu0
      %v1137 = vadd.f32 %v1110, %v1136
      %v1138 = vpop.f32.mrf.mxu0
      %1139 = vdwg.mxu0
      %v1140 = vmul.f32 %v1137, 0.5
      %v1141 = vmul.f32 %v1137, 0.70710677
      %vm1142 = vcmp.lt.f32.partialorder %v1141, 0.0
      %v1143 = vsel %vm1142, -1.0, 1.0
      %v1144 = vmul.f32 %v1141, %v1143
      %v1145 = vmul.f32 %v1144, 0.3275911
      %v1146 = vadd.f32 %v1145, 1.0
      %v1147 = vrcp.pop %v1146
      %v1148 = vmul.f32 %v1146, %v1147
      %v1149 = vsub.f32 1.0, %v1148
      %v1150 = vmul.f32 %v1147, %v1149
      %v1151 = vadd.f32 %v1147, %v1150
      %vm1152 = vweird.f32 %v1146
      %vm1153 = vweird.f32 %v1147
      %vm1154 = vmor %vm1152, %vm1153
      %v1155 = vsel %vm1154, %v1147, %v1151
      %v1156 = vand.u32 2147483647, %v1146
      %vm1157 = vcmp.eq.f32.partialorder %v1156, 8.507059e+37
      %v1158 = vand.u32 %v1146, 2147483648
      %v1159 = vor.u32 1.1754944e-38, %v1158
      %v1160 = vsel %vm1157, %v1159, %v1155
      %v1161 = vmul.f32 1.0, %v1160
      %v1162 = vmul.f32 %v1161, 1.0614054
      %v1163 = vadd.f32 %v1162, -1.4531521
      %v1164 = vmul.f32 %v1163, %v1161
      %v1165 = vadd.f32 %v1164, 1.4214138
      %v1166 = vmul.f32 %v1165, %v1161
      %v1167 = vadd.f32 %v1166, -0.28449672
      %v1168 = vmul.f32 %v1167, %v1161
      %v1169 = vadd.f32 %v1168, 0.2548296
      %v1170 = vmul.f32 %v1169, %v1161
      %v1171 = vsub.f32 0.0, %v1144
      %v1172 = vmul.f32 %v1171, %v1144
      %v1173 = vmul.f32 %v1172, 1.442695
      %v1174 = vpow.pop %v1173
      %v1175 = vmul.f32 %v1170, %v1174
      %v1176 = vsub.f32 1.0, %v1175
      %v1177 = vmul.f32 %v1143, %v1176
      %v1178 = vadd.f32 %v1177, 1.0
      %v1179 = vmul.f32 %v1140, %v1178
      %v1180 = vpack.c.bf16 %v1179, %v1179
      %v1181 = vld [vmem:[%s15] sm:$0xf]
      %v1182 = vld [vmem:[%s15 + $0x4] sm:$0xf]
      %v1183 = vld [vmem:[%s15 + $0x8] sm:$0xf]
      %v1184 = vld [vmem:[%s15 + $0xc] sm:$0xf]
      %v1185 = vld [vmem:[%s15 + $0x10] sm:$0xf]
      %v1186 = vld [vmem:[%s15 + $0x14] sm:$0xf]
      %v1187 = vld [vmem:[%s15 + $0x18] sm:$0xf]
      %v1188 = vld [vmem:[%s15 + $0x1c] sm:$0xf]
      %v1189 = vld [vmem:[%s16] sm:$0x1]
      %v1191 = vperm.slane %v1189, 0
      %v1201 = vunpack.c.l.b16 %v1181
      %v1202 = vunpack.c.l.b16 %v1182
      %v1203 = vunpack.c.l.b16 %v1183
      %v1204 = vunpack.c.l.b16 %v1184
      %v1205 = vunpack.c.l.b16 %v1185
      %v1206 = vunpack.c.l.b16 %v1186
      %v1207 = vunpack.c.l.b16 %v1187
      %v1208 = vunpack.c.l.b16 %v1188
      %v1209 = vpack.c.b16 %v1202, %v1201
      %v1210 = vpack.c.b16 %v1204, %v1203
      %v1211 = vpack.c.b16 %v1206, %v1205
      %v1212 = vpack.c.b16 %v1208, %v1207
      %vm1217 = vcmask 523264
      %v1219 = vsel %vm1217, %v1180, 0
      %1221 = vmatpush.bf16.msra.mxu0 0
      %1222 = vmatpush.bf16.msra.mxu0 0
      %1223 = vmatpush.bf16.msra.mxu0 0
      %1224 = vmatpush.bf16.msra.mxu0 0
      %1225 = vmatpush.bf16.msra.mxu0 %v1212
      %1226 = vmatpush.bf16.msra.mxu0 %v1211
      %1227 = vmatpush.bf16.msra.mxu0 %v1210
      %1228 = vmatpush.bf16.msra.mxu0 %v1209
      %1229 = vmatmul.bf16.gmra.mxu0 %v1219
      %v1230 = vpop.f32.mrf.mxu0
      %v1231 = vadd.f32 %v1191, %v1230
      %v1232 = vpop.f32.mrf.mxu0
      %1233 = vdwg.mxu0
      %v1234 = vadd.f32 %v1102, %v1231
      %v1235 = vld [vmem:[%s17] sm:$0x1]
      %v1236 = vld [vmem:[%s18] sm:$0x1]
      %v1237 = vsel %vm841, %v1234, 0.0
      %1238 = vadd.xlane.f32.xlu0 %v1237
      %v1239 = vpop.xlane.xlu0 %1238
      %v1240 = vmul.f32 %v1239, %v1075
      %v1241 = vsub.f32 %v1234, %v1240
      %v1242 = vmul.f32 %v1241, %v1241
      %v1243 = vsel %vm841, %v1242, 0.0
      %1244 = vadd.xlane.f32.xlu0 %v1243
      %v1245 = vpop.xlane.xlu0 %1244
      %v1246 = vmul.f32 %v1245, %v1075
      %v1247 = vadd.f32 %v1246, 1e-12
      %v1248 = vrsqrt.pop %v1247
      %v1249 = vmul.f32 %v1248, %v1247
      %v1250 = vmul.f32 %v1249, %v1248
      %v1251 = vmul.f32 0.5, %v1250
      %v1252 = vsub.f32 1.5, %v1251
      %v1253 = vmul.f32 %v1248, %v1252
      %vm1254 = vweird.f32 %v1247
      %vm1255 = vweird.f32 %v1248
      %vm1256 = vmor %vm1254, %vm1255
      %v1257 = vsel %vm1256, %v1248, %v1253
      %v1258 = vmul.f32 %v1241, %v1257
      %v1260 = vperm.slane %v1235, 0
      %v1262 = vmul.f32 %v1258, %v1260
      %v1264 = vperm.slane %v1236, 0
      %v1266 = vadd.f32 %v1262, %v1264
      %1267 = vst.msk [vmem:[%s659] sm:$0xff] %vm841, %v1266
      %p1268 = scmp.lt.s32.totalorder %s34, 1
      %s1269 = scalar_select %p1268, %s34, 1
      %p1270 = scmp.lt.s32.totalorder %s35, 0
      %s1271 = scalar_select %p1270, %s35, 0
      %s1272 = sadd.s32 %s1271, %s1269
      %s1273 = smul.addr %s1272, 8
      %s1274 = scalar_lea.vmem %s19, %s1273
      // Predicated region
      $region101: #{contrastive_bert_forward.4} parent=95 // pred_check
        %p1275 = pneg %p478
      $region102: #{contrastive_bert_forward.4} parent=95 // pred_check_branch
        %1277 = sbr.rel (%p1275) target = $region104
      $region103: #{contrastive_bert_forward.4} parent=95 // pred_region
        _
      $region104: #{contrastive_bert_forward.4} parent=95 // pred_fallthru
        _
    $region96: #{contrastive_bert_forward.4} parent=5 // pred_fallthru
      _
    %p1278 = scmp.le.s32.totalorder 2, %s25
    // Predicated region
    $region105: #{contrastive_bert_forward.4} parent=5 // pred_check
      %p1279 = pneg %p1278
    $region106: #{contrastive_bert_forward.4} parent=5 // pred_check_branch
      %1281 = sbr.rel (%p1279) target = $region108
    $region107: #{contrastive_bert_forward.4} parent=5 // pred_region
      %s1282 = ssub.s32 %s25, 2
      // Predicated region
      $region109: #{contrastive_bert_forward.4} parent=107 // pred_check
        %p1283 = pneg %p484
      $region110: #{contrastive_bert_forward.4} parent=107 // pred_check_branch
        %1285 = sbr.rel (%p1283) target = $region112
      $region111: #{contrastive_bert_forward.4} parent=107 // pred_region
        %p1286 = scmp.lt.s32.totalorder %s36, 1
        %s1287 = scalar_select %p1286, %s36, 1
        %p1288 = scmp.lt.s32.totalorder %s37, 0
        %s1289 = scalar_select %p1288, %s37, 0
        %s1290 = sadd.s32 %s1289, %s1287
        %s1291 = smul.addr %s1290, 8
        %s1292 = scalar_lea.vmem %s19, %s1291
      $region112: #{contrastive_bert_forward.4} parent=107 // pred_fallthru
        _
    $region108: #{contrastive_bert_forward.4} parent=5 // pred_fallthru
      _
  $region6: #{contrastive_bert_forward.4} parent=0 // loop_footer
    %s29 = sadd.s32 1, %s25
  $region7: #{contrastive_bert_forward.4} parent=0 // loop_footer_branch
    %24 = sbr.rel target = $region3
  $region8: #{contrastive_bert_forward.4} parent=0 // loop_exit
    _

</llo_original>
